<compile_context>
chip_gen: v7x
topology: tpu7x:2x2x1
jax: 0.10.0
libtpu: 0.0.40
codegen_flags: <defaults>
</compile_context>

<pallas_src>
import jax
import jax.numpy as jnp
import numpy as np
from jax.experimental import pallas as pl
from jax.experimental.pallas import tpu as pltpu


def _fold_lanes_to_128(a):
    """(C, T) -> (C, 128) via lane-aligned pairwise halving (pure VPU adds).

    T must be 128 * 2**k, which the wrapper guarantees.
    """
    n = a.shape[-1]
    while n > 128:
        n //= 2
        a = a[:, :n] + a[:, n:]
    return a


def _make_dice_sums_kernel(n_sp, tile_n, tiles_per_chunk, num_tiles):
    has_tail = (n_sp % tile_n) != 0

    def kernel(x_ref, t_ref, out_ref, acc_int, acc_psq, acc_tsq):
        chunk = pl.program_id(1)
        i = pl.program_id(2)

        @pl.when(i == 0)
        def _():
            acc_int[...] = jnp.zeros_like(acc_int)
            acc_psq[...] = jnp.zeros_like(acc_psq)
            acc_tsq[...] = jnp.zeros_like(acc_tsq)

        x = x_ref[...].astype(jnp.float32)   # (C, T); bf16 inputs widened here
        t = t_ref[...].astype(jnp.int32)     # (1, T); int8/int16 in HBM
        C, T = x.shape

        # Softmax over the channel axis (== nn.Softmax(dim=1)).
        m = jnp.max(x, axis=0, keepdims=True)
        e = jnp.exp(x - m)
        s = jnp.sum(e, axis=0, keepdims=True)
        # approx=True -> EUP vrcp in an otherwise idle slot; ~1e-4 relative
        # error on the normalization, well inside the test tolerance.
        p = e * pl.reciprocal(s, approx=True)

        cls = jax.lax.broadcasted_iota(jnp.int32, (C, T), 0)

        def accumulate(p_eff, sel):
            # intersect = sum(p * onehot); psq = sum(p^2); tsq = sum(onehot).
            acc_int[...] += _fold_lanes_to_128(jnp.where(sel, p_eff, 0.0))
            acc_psq[...] += _fold_lanes_to_128(p_eff * p_eff)
            acc_tsq[...] += _fold_lanes_to_128(sel.astype(jnp.float32))

        if has_tail:
            g = chunk * tiles_per_chunk + i           # global spatial-tile index

            @pl.when(g != num_tiles - 1)
            def _():                                   # fast path: full tile, no mask
                accumulate(p, t == cls)

            @pl.when(g == num_tiles - 1)
            def _():                                   # tail tile: mask padded lanes
                lane = jax.lax.broadcasted_iota(jnp.int32, (1, T), 1)
                valid = lane < (n_sp - g * T)
                # Garbage labels / activations in the padded tail must not
                # contribute to any of the three sums.
                sel = jnp.logical_and(t == cls, valid)
                accumulate(jnp.where(valid, p, 0.0), sel)
        else:
            accumulate(p, t == cls)

        # Single cross-lane reduce + narrow store per (batch, chunk).
        @pl.when(i == pl.num_programs(2) - 1)
        def _():
            out_ref[...] = jnp.concatenate(
                [jnp.sum(acc_int[...], axis=1, keepdims=True),
                 jnp.sum(acc_psq[...], axis=1, keepdims=True),
                 jnp.sum(acc_tsq[...], axis=1, keepdims=True)],
                axis=1)

    return kernel


def _pick_tile_n(n_sp, c, in_itemsize, *, buffer_count=2,
                 vmem_budget_bytes=12 * 1024 * 1024):
    """Largest power-of-two lane tile (>=128) whose estimated VMEM footprint
    fits the budget.  The footprint is sized on the f32 compute path
    (buffer_count pipelined input copies + ~4 live f32 intermediates per
    lane-column), so bf16 inputs do not silently double the scratch usage."""
    per_lane = c * (buffer_count * in_itemsize + 4 * 4) + buffer_count  # + labels
    cap = max(128, 1 << (max(int(n_sp), 1).bit_length() - 1))  # floor pow2 of n_sp
    t = 128
    while t * 2 <= cap and (t * 2) * per_lane <= vmem_budget_bytes:
        t *= 2
    return t


def dice_loss(logits, target, weight, *, epsilon=1e-6, tile_n=None,
              x_buffer_count=2):
    """logits: (B, C, H, W, D) float (f32 or bf16 -- bf16 halves HBM traffic);
    target: (B, H, W, D) int; weight: (C,) float.
    Returns 1 - sum(weight * per_channel_dice) (mode='extension')."""
    B, C, H, W, D = logits.shape
    n_sp = H * W * D

    # Free reshapes only -- no extra HBM transpose pass; keep the caller's
    # logits dtype (the kernel upcasts tiles to f32 internally).
    x = logits.reshape(B, C, n_sp)
    # int8 would silently overflow for >127 classes / ignore-labels like 255.
    label_dtype = jnp.int8 if C <= 127 else jnp.int16
    t = target.astype(label_dtype).reshape(B, 1, n_sp)

    if tile_n is None:
        tile_n = _pick_tile_n(n_sp, C, x.dtype.itemsize,
                              buffer_count=x_buffer_count)
    assert tile_n >= 128 and (tile_n & (tile_n - 1)) == 0, \
        "tile_n must be a power of two >= 128"

    num_tiles = pl.cdiv(n_sp, tile_n)
    # Split the spatial axis into 2 parallel chunks when the tile count allows,
    # so both v7x TensorCores get work even at B == 1 (no-op on v5e/v6e).
    # TODO(synk): uneven chunking for odd num_tiles > 1 left out for simplicity.
    n_chunks = 2 if (num_tiles % 2 == 0) else 1
    tiles_per_chunk = num_tiles // n_chunks

    x_spec_kwargs = {}
    if x_buffer_count != 2:
        # Opt-in deeper pipelining if xprof shows exposed DMA on big tiles.
        x_spec_kwargs["pipeline_mode"] = pl.Buffered(x_buffer_count)

    sums = pl.pallas_call(
        _make_dice_sums_kernel(n_sp, tile_n, tiles_per_chunk, num_tiles),
        out_shape=jax.ShapeDtypeStruct((B, n_chunks, C, 3), jnp.float32),
        grid_spec=pltpu.PrefetchScalarGridSpec(
            num_scalar_prefetch=0,
            grid=(B, n_chunks, tiles_per_chunk),
            in_specs=[
                pl.BlockSpec((None, C, tile_n),
                             lambda b, c, i: (b, 0, c * tiles_per_chunk + i),
                             **x_spec_kwargs),
                pl.BlockSpec((None, 1, tile_n),
                             lambda b, c, i: (b, 0, c * tiles_per_chunk + i)),
            ],
            out_specs=pl.BlockSpec((None, None, C, 3),
                                   lambda b, c, i: (b, c, 0, 0)),
            scratch_shapes=[
                pltpu.VMEM((C, 128), jnp.float32),   # intersect lane-partials
                pltpu.VMEM((C, 128), jnp.float32),   # sum(p^2)   lane-partials
                pltpu.VMEM((C, 128), jnp.float32),   # sum(t^2)   lane-partials
            ],
        ),
        compiler_params=pltpu.CompilerParams(
            dimension_semantics=("parallel", "parallel", "arbitrary"),
            vmem_limit_bytes=32 * 1024 * 1024,
        ),
        cost_estimate=pl.CostEstimate(
            flops=10 * B * C * n_sp,
            transcendentals=B * C * n_sp,
            bytes_accessed=(B * C * n_sp * x.dtype.itemsize
                            + B * n_sp * t.dtype.itemsize
                            + B * n_chunks * C * 3 * 4),
        ),
    )(x, t)

    # Tiny per-class epilogue in JAX (matches compute_per_channel_dice, 'extension').
    sums = jnp.sum(sums.astype(jnp.float32), axis=(0, 1))   # (C, 3) over batch+chunks
    intersect = sums[:, 0]
    denominator = sums[:, 1] + sums[:, 2]
    per_channel_dice = 2.0 * (intersect / jnp.maximum(denominator, epsilon))
    weighted_dsc = jnp.sum(per_channel_dice * weight.astype(jnp.float32))
    return 1.0 - weighted_dsc


def _dice_loss_ref(logits, target, weight, epsilon=1e-6):
    """Pure-JAX reference mirroring the PyTorch DiceLoss forward."""
    B, C = logits.shape[0], logits.shape[1]
    p = jax.nn.softmax(logits.astype(jnp.float32), axis=1).reshape(B, C, -1)
    onehot = jax.nn.one_hot(target.reshape(B, -1), C, axis=1, dtype=jnp.float32)
    intersect = jnp.sum(p * onehot, axis=(0, 2))
    denom = jnp.sum(p * p, axis=(0, 2)) + jnp.sum(onehot, axis=(0, 2))
    dice = 2.0 * (intersect / jnp.maximum(denom, epsilon))
    return 1.0 - jnp.sum(dice * weight.astype(jnp.float32))


if __name__ == "__main__":
    key = jax.random.PRNGKey(0)

    # Case 1: small shapes consistent with forward(): (B, C, H, W, D) / (B, H, W, D).
    B, C, H, W, D = 2, 4, 16, 16, 16
    k_logits, k_target, key = jax.random.split(key, 3)
    logits = jax.random.normal(k_logits, (B, C, H, W, D), dtype=jnp.float32)
    target = jax.random.randint(k_target, (B, H, W, D), 0, C, dtype=jnp.int32)
    weight = jnp.full((C,), 1.0 / C, dtype=jnp.float32)

    loss = jax.jit(dice_loss)(logits, target, weight)
    jax.block_until_ready(loss)
    ref = _dice_loss_ref(logits, target, weight)
    np.testing.assert_allclose(np.asarray(loss), np.asarray(ref),
                               rtol=5e-4, atol=5e-4)

    # Case 2: exercises the chunked grid + tail-mask path (B=1, odd C,
    # non-power-of-two spatial size -> 2 tiles, partial last tile).
    B2, C2, H2, W2, D2 = 1, 5, 16, 16, 24
    k_logits2, k_target2, key = jax.random.split(key, 3)
    logits2 = jax.random.normal(k_logits2, (B2, C2, H2, W2, D2), dtype=jnp.float32)
    target2 = jax.random.randint(k_target2, (B2, H2, W2, D2), 0, C2, dtype=jnp.int32)
    weight2 = (jnp.arange(1, C2 + 1, dtype=jnp.float32)
               / jnp.sum(jnp.arange(1, C2 + 1, dtype=jnp.float32)))

    loss2 = jax.jit(dice_loss)(logits2, target2, weight2)
    jax.block_until_ready(loss2)
    ref2 = _dice_loss_ref(logits2, target2, weight2)
    np.testing.assert_allclose(np.asarray(loss2), np.asarray(ref2),
                               rtol=5e-4, atol=5e-4)

    print("KERNEL_OK")
</pallas_src>

<mosaic_0001>
module attributes {stable_mosaic.version = 11 : i64} {
  func.func @kernel(%arg0: i32, %arg1: i32, %arg2: i32, %arg3: memref<1x4x4096xf32, #tpu.memory_space<vmem>>, %arg4: memref<1x1x4096xi8, #tpu.memory_space<vmem>>, %arg5: memref<1x1x4x3xf32, #tpu.memory_space<vmem>>, %arg6: memref<4x128xf32, #tpu.memory_space<vmem>>, %arg7: memref<4x128xf32, #tpu.memory_space<vmem>>, %arg8: memref<4x128xf32, #tpu.memory_space<vmem>>) attributes {dimension_semantics = [#tpu.dimension_semantics<parallel>, #tpu.dimension_semantics<parallel>, #tpu.dimension_semantics<arbitrary>], iteration_bounds = array<i64: 2, 1, 1>, scalar_prefetch = 0 : i64, scratch_operands = 3 : i64, tpu.core_type = #tpu.core_type<tc>, window_params = [{transform_indices = @transform_0, window_bounds = array<i64: 1, 4, 4096>}, {transform_indices = @transform_1, window_bounds = array<i64: 1, 1, 4096>}, {transform_indices = @transform_2, window_bounds = array<i64: 1, 1, 4, 3>}]} {
    %c0_i32 = arith.constant 0 : i32
    %0 = arith.cmpi eq, %arg2, %c0_i32 : i32
    %1 = arith.extui %0 : i1 to i32
    %c0_i32_0 = arith.constant 0 : i32
    %2 = arith.cmpi ne, %1, %c0_i32_0 : i32
    scf.if %2 {
      %cst_22 = arith.constant 0.000000e+00 : f32
      %83 = vector.broadcast %cst_22 : f32 to vector<4x128xf32>
      %c0_23 = arith.constant 0 : index
      %c0_24 = arith.constant 0 : index
      %84 = vector.load %arg6[%c0_23, %c0_24] : memref<4x128xf32, #tpu.memory_space<vmem>>, vector<4x128xf32>
      tpu.vector_store %arg6[%c0_23, %c0_24], %83 {strides = array<i32>} : memref<4x128xf32, #tpu.memory_space<vmem>>, vector<4x128xf32>,
      %cst_25 = arith.constant 0.000000e+00 : f32
      %85 = vector.broadcast %cst_25 : f32 to vector<4x128xf32>
      %c0_26 = arith.constant 0 : index
      %c0_27 = arith.constant 0 : index
      %86 = vector.load %arg7[%c0_26, %c0_27] : memref<4x128xf32, #tpu.memory_space<vmem>>, vector<4x128xf32>
      tpu.vector_store %arg7[%c0_26, %c0_27], %85 {strides = array<i32>} : memref<4x128xf32, #tpu.memory_space<vmem>>, vector<4x128xf32>,
      %cst_28 = arith.constant 0.000000e+00 : f32
      %87 = vector.broadcast %cst_28 : f32 to vector<4x128xf32>
      %c0_29 = arith.constant 0 : index
      %c0_30 = arith.constant 0 : index
      %88 = vector.load %arg8[%c0_29, %c0_30] : memref<4x128xf32, #tpu.memory_space<vmem>>, vector<4x128xf32>
      tpu.vector_store %arg8[%c0_29, %c0_30], %87 {strides = array<i32>} : memref<4x128xf32, #tpu.memory_space<vmem>>, vector<4x128xf32>,
    } else {
    }
    %c0 = arith.constant 0 : index
    %c0_1 = arith.constant 0 : index
    %c0_2 = arith.constant 0 : index
    %3 = vector.load %arg3[%c0, %c0_1, %c0_2] : memref<1x4x4096xf32, #tpu.memory_space<vmem>>, vector<1x4x4096xf32>
    %4 = vector.shape_cast %3 : vector<1x4x4096xf32> to vector<4x4096xf32>
    %c0_3 = arith.constant 0 : index
    %c0_4 = arith.constant 0 : index
    %c0_5 = arith.constant 0 : index
    %5 = vector.load %arg4[%c0_3, %c0_4, %c0_5] : memref<1x1x4096xi8, #tpu.memory_space<vmem>>, vector<1x1x4096xi8>
    %6 = vector.shape_cast %5 : vector<1x1x4096xi8> to vector<1x4096xi8>
    %7 = arith.extsi %6 : vector<1x4096xi8> to vector<1x4096xi32>
    %cst = arith.constant dense<0xFF800000> : vector<4096xf32>
    %8 = vector.multi_reduction <maximumf>, %4, %cst [0] : vector<4x4096xf32> to vector<4096xf32>
    %9 = vector.shape_cast %8 : vector<4096xf32> to vector<1x4096xf32>
    %10 = vector.broadcast %9 : vector<1x4096xf32> to vector<4x4096xf32>
    %11 = arith.subf %4, %10 : vector<4x4096xf32>
    %12 = math.exp %11 : vector<4x4096xf32>
    %cst_6 = arith.constant dense<0.000000e+00> : vector<4096xf32>
    %13 = vector.multi_reduction <add>, %12, %cst_6 [0] : vector<4x4096xf32> to vector<4096xf32>
    %14 = vector.shape_cast %13 : vector<4096xf32> to vector<1x4096xf32>
    %15 = tpu.reciprocal %14 {approx = true} : vector<1x4096xf32> -> vector<1x4096xf32>
    %16 = vector.broadcast %15 : vector<1x4096xf32> to vector<4x4096xf32>
    %17 = arith.mulf %12, %16 : vector<4x4096xf32>
    %18 = tpu.iota {dimensions = array<i32: 0>} : vector<4x4096xi32>
    %19 = vector.broadcast %7 : vector<1x4096xi32> to vector<4x4096xi32>
    %20 = arith.cmpi eq, %19, %18 : vector<4x4096xi32>
    %c0_7 = arith.constant 0 : index
    %c0_8 = arith.constant 0 : index
    %21 = vector.load %arg6[%c0_7, %c0_8] : memref<4x128xf32, #tpu.memory_space<vmem>>, vector<4x128xf32>
    %cst_9 = arith.constant 0.000000e+00 : f32
    %22 = vector.broadcast %cst_9 : f32 to vector<4x4096xf32>
    %23 = arith.select %20, %17, %22 : vector<4x4096xi1>, vector<4x4096xf32>
    %24 = vector.extract_strided_slice %23 {offsets = [0, 0], sizes = [4, 2048], strides = [1, 1]} : vector<4x4096xf32> to vector<4x2048xf32>
    %25 = vector.extract_strided_slice %23 {offsets = [0, 2048], sizes = [4, 2048], strides = [1, 1]} : vector<4x4096xf32> to vector<4x2048xf32>
    %26 = arith.addf %24, %25 : vector<4x2048xf32>
    %27 = vector.extract_strided_slice %26 {offsets = [0, 0], sizes = [4, 1024], strides = [1, 1]} : vector<4x2048xf32> to vector<4x1024xf32>
    %28 = vector.extract_strided_slice %26 {offsets = [0, 1024], sizes = [4, 1024], strides = [1, 1]} : vector<4x2048xf32> to vector<4x1024xf32>
    %29 = arith.addf %27, %28 : vector<4x1024xf32>
    %30 = vector.extract_strided_slice %29 {offsets = [0, 0], sizes = [4, 512], strides = [1, 1]} : vector<4x1024xf32> to vector<4x512xf32>
    %31 = vector.extract_strided_slice %29 {offsets = [0, 512], sizes = [4, 512], strides = [1, 1]} : vector<4x1024xf32> to vector<4x512xf32>
    %32 = arith.addf %30, %31 : vector<4x512xf32>
    %33 = vector.extract_strided_slice %32 {offsets = [0, 0], sizes = [4, 256], strides = [1, 1]} : vector<4x512xf32> to vector<4x256xf32>
    %34 = vector.extract_strided_slice %32 {offsets = [0, 256], sizes = [4, 256], strides = [1, 1]} : vector<4x512xf32> to vector<4x256xf32>
    %35 = arith.addf %33, %34 : vector<4x256xf32>
    %36 = vector.extract_strided_slice %35 {offsets = [0, 0], sizes = [4, 128], strides = [1, 1]} : vector<4x256xf32> to vector<4x128xf32>
    %37 = vector.extract_strided_slice %35 {offsets = [0, 128], sizes = [4, 128], strides = [1, 1]} : vector<4x256xf32> to vector<4x128xf32>
    %38 = arith.addf %36, %37 : vector<4x128xf32>
    %39 = arith.addf %21, %38 : vector<4x128xf32>
    %c0_10 = arith.constant 0 : index
    %c0_11 = arith.constant 0 : index
    %40 = vector.load %arg6[%c0_10, %c0_11] : memref<4x128xf32, #tpu.memory_space<vmem>>, vector<4x128xf32>
    tpu.vector_store %arg6[%c0_10, %c0_11], %39 {strides = array<i32>} : memref<4x128xf32, #tpu.memory_space<vmem>>, vector<4x128xf32>,
    %c0_12 = arith.constant 0 : index
    %c0_13 = arith.constant 0 : index
    %41 = vector.load %arg7[%c0_12, %c0_13] : memref<4x128xf32, #tpu.memory_space<vmem>>, vector<4x128xf32>
    %42 = arith.mulf %17, %17 : vector<4x4096xf32>
    %43 = vector.extract_strided_slice %42 {offsets = [0, 0], sizes = [4, 2048], strides = [1, 1]} : vector<4x4096xf32> to vector<4x2048xf32>
    %44 = vector.extract_strided_slice %42 {offsets = [0, 2048], sizes = [4, 2048], strides = [1, 1]} : vector<4x4096xf32> to vector<4x2048xf32>
    %45 = arith.addf %43, %44 : vector<4x2048xf32>
    %46 = vector.extract_strided_slice %45 {offsets = [0, 0], sizes = [4, 1024], strides = [1, 1]} : vector<4x2048xf32> to vector<4x1024xf32>
    %47 = vector.extract_strided_slice %45 {offsets = [0, 1024], sizes = [4, 1024], strides = [1, 1]} : vector<4x2048xf32> to vector<4x1024xf32>
    %48 = arith.addf %46, %47 : vector<4x1024xf32>
    %49 = vector.extract_strided_slice %48 {offsets = [0, 0], sizes = [4, 512], strides = [1, 1]} : vector<4x1024xf32> to vector<4x512xf32>
    %50 = vector.extract_strided_slice %48 {offsets = [0, 512], sizes = [4, 512], strides = [1, 1]} : vector<4x1024xf32> to vector<4x512xf32>
    %51 = arith.addf %49, %50 : vector<4x512xf32>
    %52 = vector.extract_strided_slice %51 {offsets = [0, 0], sizes = [4, 256], strides = [1, 1]} : vector<4x512xf32> to vector<4x256xf32>
    %53 = vector.extract_strided_slice %51 {offsets = [0, 256], sizes = [4, 256], strides = [1, 1]} : vector<4x512xf32> to vector<4x256xf32>
    %54 = arith.addf %52, %53 : vector<4x256xf32>
    %55 = vector.extract_strided_slice %54 {offsets = [0, 0], sizes = [4, 128], strides = [1, 1]} : vector<4x256xf32> to vector<4x128xf32>
    %56 = vector.extract_strided_slice %54 {offsets = [0, 128], sizes = [4, 128], strides = [1, 1]} : vector<4x256xf32> to vector<4x128xf32>
    %57 = arith.addf %55, %56 : vector<4x128xf32>
    %58 = arith.addf %41, %57 : vector<4x128xf32>
    %c0_14 = arith.constant 0 : index
    %c0_15 = arith.constant 0 : index
    %59 = vector.load %arg7[%c0_14, %c0_15] : memref<4x128xf32, #tpu.memory_space<vmem>>, vector<4x128xf32>
    tpu.vector_store %arg7[%c0_14, %c0_15], %58 {strides = array<i32>} : memref<4x128xf32, #tpu.memory_space<vmem>>, vector<4x128xf32>,
    %c0_16 = arith.constant 0 : index
    %c0_17 = arith.constant 0 : index
    %60 = vector.load %arg8[%c0_16, %c0_17] : memref<4x128xf32, #tpu.memory_space<vmem>>, vector<4x128xf32>
    %61 = arith.extui %20 : vector<4x4096xi1> to vector<4x4096xi32>
    %62 = arith.sitofp %61 : vector<4x4096xi32> to vector<4x4096xf32>
    %63 = vector.extract_strided_slice %62 {offsets = [0, 0], sizes = [4, 2048], strides = [1, 1]} : vector<4x4096xf32> to vector<4x2048xf32>
    %64 = vector.extract_strided_slice %62 {offsets = [0, 2048], sizes = [4, 2048], strides = [1, 1]} : vector<4x4096xf32> to vector<4x2048xf32>
    %65 = arith.addf %63, %64 : vector<4x2048xf32>
    %66 = vector.extract_strided_slice %65 {offsets = [0, 0], sizes = [4, 1024], strides = [1, 1]} : vector<4x2048xf32> to vector<4x1024xf32>
    %67 = vector.extract_strided_slice %65 {offsets = [0, 1024], sizes = [4, 1024], strides = [1, 1]} : vector<4x2048xf32> to vector<4x1024xf32>
    %68 = arith.addf %66, %67 : vector<4x1024xf32>
    %69 = vector.extract_strided_slice %68 {offsets = [0, 0], sizes = [4, 512], strides = [1, 1]} : vector<4x1024xf32> to vector<4x512xf32>
    %70 = vector.extract_strided_slice %68 {offsets = [0, 512], sizes = [4, 512], strides = [1, 1]} : vector<4x1024xf32> to vector<4x512xf32>
    %71 = arith.addf %69, %70 : vector<4x512xf32>
    %72 = vector.extract_strided_slice %71 {offsets = [0, 0], sizes = [4, 256], strides = [1, 1]} : vector<4x512xf32> to vector<4x256xf32>
    %73 = vector.extract_strided_slice %71 {offsets = [0, 256], sizes = [4, 256], strides = [1, 1]} : vector<4x512xf32> to vector<4x256xf32>
    %74 = arith.addf %72, %73 : vector<4x256xf32>
    %75 = vector.extract_strided_slice %74 {offsets = [0, 0], sizes = [4, 128], strides = [1, 1]} : vector<4x256xf32> to vector<4x128xf32>
    %76 = vector.extract_strided_slice %74 {offsets = [0, 128], sizes = [4, 128], strides = [1, 1]} : vector<4x256xf32> to vector<4x128xf32>
    %77 = arith.addf %75, %76 : vector<4x128xf32>
    %78 = arith.addf %60, %77 : vector<4x128xf32>
    %c0_18 = arith.constant 0 : index
    %c0_19 = arith.constant 0 : index
    %79 = vector.load %arg8[%c0_18, %c0_19] : memref<4x128xf32, #tpu.memory_space<vmem>>, vector<4x128xf32>
    tpu.vector_store %arg8[%c0_18, %c0_19], %78 {strides = array<i32>} : memref<4x128xf32, #tpu.memory_space<vmem>>, vector<4x128xf32>,
    %c0_i32_20 = arith.constant 0 : i32
    %80 = arith.cmpi eq, %arg2, %c0_i32_20 : i32
    %81 = arith.extui %80 : i1 to i32
    %c0_i32_21 = arith.constant 0 : i32
    %82 = arith.cmpi ne, %81, %c0_i32_21 : i32
    scf.if %82 {
      %c0_22 = arith.constant 0 : index
      %c0_23 = arith.constant 0 : index
      %83 = vector.load %arg6[%c0_22, %c0_23] : memref<4x128xf32, #tpu.memory_space<vmem>>, vector<4x128xf32>
      %cst_24 = arith.constant dense<0.000000e+00> : vector<4xf32>
      %84 = vector.multi_reduction <add>, %83, %cst_24 [1] : vector<4x128xf32> to vector<4xf32>
      %85 = vector.shape_cast %84 : vector<4xf32> to vector<4x1xf32>
      %c0_25 = arith.constant 0 : index
      %c0_26 = arith.constant 0 : index
      %86 = vector.load %arg7[%c0_25, %c0_26] : memref<4x128xf32, #tpu.memory_space<vmem>>, vector<4x128xf32>
      %cst_27 = arith.constant dense<0.000000e+00> : vector<4xf32>
      %87 = vector.multi_reduction <add>, %86, %cst_27 [1] : vector<4x128xf32> to vector<4xf32>
      %88 = vector.shape_cast %87 : vector<4xf32> to vector<4x1xf32>
      %c0_28 = arith.constant 0 : index
      %c0_29 = arith.constant 0 : index
      %89 = vector.load %arg8[%c0_28, %c0_29] : memref<4x128xf32, #tpu.memory_space<vmem>>, vector<4x128xf32>
      %cst_30 = arith.constant dense<0.000000e+00> : vector<4xf32>
      %90 = vector.multi_reduction <add>, %89, %cst_30 [1] : vector<4x128xf32> to vector<4xf32>
      %91 = vector.shape_cast %90 : vector<4xf32> to vector<4x1xf32>
      %92 = tpu.concatenate %85, %88, %91 in 1 : vector<4x1xf32>, vector<4x1xf32>, vector<4x1xf32> -> vector<4x3xf32>
      %c0_31 = arith.constant 0 : index
      %c0_32 = arith.constant 0 : index
      %c0_33 = arith.constant 0 : index
      %c0_34 = arith.constant 0 : index
      %93 = vector.load %arg5[%c0_31, %c0_32, %c0_33, %c0_34] : memref<1x1x4x3xf32, #tpu.memory_space<vmem>>, vector<1x1x4x3xf32>
      %94 = vector.shape_cast %93 : vector<1x1x4x3xf32> to vector<4x3xf32>
      %95 = vector.shape_cast %92 : vector<4x3xf32> to vector<1x1x4x3xf32>
      tpu.vector_store %arg5[%c0_31, %c0_32, %c0_33, %c0_34], %95 {strides = array<i32>} : memref<1x1x4x3xf32, #tpu.memory_space<vmem>>, vector<1x1x4x3xf32>,
    } else {
    }
    return
  }
  func.func @transform_0(%arg0: i32, %arg1: i32, %arg2: i32) -> (i32, i32, i32) {
    %c1_i32 = arith.constant 1 : i32
    %0 = arith.muli %arg1, %c1_i32 : i32
    %1 = arith.addi %0, %arg2 : i32
    %c0_i32 = arith.constant 0 : i32
    %c0_i32_0 = arith.constant 0 : i32
    return %arg0, %c0_i32, %1 : i32, i32, i32
  }
  func.func @transform_1(%arg0: i32, %arg1: i32, %arg2: i32) -> (i32, i32, i32) {
    %c1_i32 = arith.constant 1 : i32
    %0 = arith.muli %arg1, %c1_i32 : i32
    %1 = arith.addi %0, %arg2 : i32
    %c0_i32 = arith.constant 0 : i32
    %c0_i32_0 = arith.constant 0 : i32
    return %arg0, %c0_i32, %1 : i32, i32, i32
  }
  func.func @transform_2(%arg0: i32, %arg1: i32, %arg2: i32) -> (i32, i32, i32, i32) {
    %c0_i32 = arith.constant 0 : i32
    %c0_i32_0 = arith.constant 0 : i32
    %c0_i32_1 = arith.constant 0 : i32
    return %arg0, %arg1, %c0_i32, %c0_i32_0 : i32, i32, i32, i32
  }
}

</mosaic_0001>

<llo_original>
// kernel: dice_loss.1
$region0: #{dice_loss.1}
  #allocation0 [shape = 'u32[]', space=smem, size = 0x4, offset = 0x4, fixed_abs, tag = 'smem constant byte address 0x4 - core index']
  #allocation1 [shape = 'u32[144,128]{1,0:T(1,128)}', space=vmem, size = 0x12000, scoped, tag = 'internal scratch']
  #allocation2 [shape = 'f32[4,128]{1,0:T(4,128)}', space=vmem, size = 0x800, scoped, tag = 'scratch operand']
  #allocation3 [shape = 'f32[4,128]{1,0:T(4,128)}', space=vmem, size = 0x800, scoped, tag = 'scratch operand']
  #allocation4 [shape = 'f32[4,128]{1,0:T(4,128)}', space=vmem, size = 0x800, scoped, tag = 'scratch operand']
  %s0 = inlined_call_operand.vmem [shape: f32[2,4,4096], index: 0, kind: input, shape index: {}]
  %s1 = inlined_call_operand.vmem [shape: s8[2,1,4096], index: 1, kind: input, shape index: {}]
  %s2 = inlined_call_operand.vmem [shape: f32[2,1,4,3], index: 2, kind: output, shape index: {}]
  %s3 = sld [smem:[#allocation0]]
  $region49: #{dice_loss.1} parent=0
    _
  %s5 = ssub.s32 1, %s3
  %s6 = scalar_select 0, %s5, %s3
  loop: start=0, step=1, limit=4
  $region2: #{dice_loss.1} parent=0 // loop_pre_header
    _
  $region3: #{dice_loss.1} parent=0 // loop_header
    %s8 = sphi 0, %s12
    %p9 = scmp.ge.s32.totalorder %s8, 4
    %s15 = sphi 0, %s34
    %s16 = sphi 0, %s30
    %s17 = sphi 0, %s26
    %s18 = sphi 0, %s15
    %s19 = sphi 0, %s16
    %s20 = sphi 0, %s17
    %s21 = sphi 0, %s18
    %s22 = sphi 0, %s19
    %s23 = sphi 0, %s20
    %s41 = sphi 0, %s43
    %s44 = sphi 0, %s41
    %s45 = sphi 0, %s44
    %s61 = sphi 0, %s45
    %s71 = sphi 0, %s73
    %s74 = sphi 0, %s71
    %s75 = sphi 0, %s74
    %s91 = sphi 0, %s75
    %s99 = sphi 0, %s101
    %s102 = sphi 0, %s99
    %s103 = sphi 0, %s102
    %s119 = sphi 0, %s103
  $region4: #{dice_loss.1} parent=0 // loop_header_branch
    %11 = sbr.rel (%p9) target = $region8
  $region5: #{dice_loss.1} parent=0 // loop_body
    %s13 = ssub.s32 %s8, 1
    %s14 = ssub.s32 %s8, 2
    %s24 = sadd.s32 1, %s17
    %p25 = scmp.ge.s32.totalorder %s24, 1
    %s26 = scalar_select %p25, 0, %s24
    %s27 = sadd.s32 1, %s16
    %s28 = scalar_select %p25, %s27, %s16
    %p29 = scmp.ge.s32.totalorder %s28, 1
    %s30 = scalar_select %p29, 0, %s28
    %s31 = sadd.s32 1, %s15
    %s32 = scalar_select %p29, %s31, %s15
    %p33 = scmp.ge.s32.totalorder %s32, 2
    %s34 = scalar_select %p33, 0, %s32
    %s35 = sadd.s32 %s16, %s17
    %s36 = sadd.s32 %s30, %s26
    %s37 = ssub.s32 %s15, %s34
    %s38 = ssub.s32 %s35, %s36
    %s39 = sor.u32 %s37, %s38
    %p40 = scmp.eq.s32.totalorder %s39, 0
    %s42 = sadd.s32 %s41, 1
    %s43 = scalar_select %p40, %s41, %s42
    %p46 = pneg %p40
    %p47 = scmp.eq.s32.totalorder %s8, 1
    %p48 = por %p46, %p47
    %p49 = scmp.ne.s32.totalorder %s41, %s44
    %p50 = scmp.eq.s32.totalorder %s8, 0
    %p51 = por %p49, %p50
    %p52 = scmp.ne.s32.totalorder %s41, %s44
    %p53 = scmp.eq.s32.totalorder %s13, 1
    %p54 = por %p52, %p53
    %p55 = scmp.ne.s32.totalorder %s44, %s45
    %p56 = scmp.eq.s32.totalorder %s13, 0
    %p57 = por %p55, %p56
    %p58 = scmp.ne.s32.totalorder %s44, %s45
    %p59 = scmp.eq.s32.totalorder %s14, 1
    %p60 = por %p58, %p59
    %p62 = scmp.ne.s32.totalorder %s45, %s61
    %p63 = scmp.eq.s32.totalorder %s14, 0
    %p64 = por %p62, %p63
    %s65 = sadd.s32 %s16, %s17
    %s66 = sadd.s32 %s30, %s26
    %s67 = ssub.s32 %s15, %s34
    %s68 = ssub.s32 %s65, %s66
    %s69 = sor.u32 %s67, %s68
    %p70 = scmp.eq.s32.totalorder %s69, 0
    %s72 = sadd.s32 %s71, 1
    %s73 = scalar_select %p70, %s71, %s72
    %p76 = pneg %p70
    %p77 = scmp.eq.s32.totalorder %s8, 1
    %p78 = por %p76, %p77
    %p79 = scmp.ne.s32.totalorder %s71, %s74
    %p80 = scmp.eq.s32.totalorder %s8, 0
    %p81 = por %p79, %p80
    %p82 = scmp.ne.s32.totalorder %s71, %s74
    %p83 = scmp.eq.s32.totalorder %s13, 1
    %p84 = por %p82, %p83
    %p85 = scmp.ne.s32.totalorder %s74, %s75
    %p86 = scmp.eq.s32.totalorder %s13, 0
    %p87 = por %p85, %p86
    %p88 = scmp.ne.s32.totalorder %s74, %s75
    %p89 = scmp.eq.s32.totalorder %s14, 1
    %p90 = por %p88, %p89
    %p92 = scmp.ne.s32.totalorder %s75, %s91
    %p93 = scmp.eq.s32.totalorder %s14, 0
    %p94 = por %p92, %p93
    %s95 = ssub.s32 %s15, %s34
    %s96 = ssub.s32 %s16, %s30
    %s97 = sor.u32 %s95, %s96
    %p98 = scmp.eq.s32.totalorder %s97, 0
    %s100 = sadd.s32 %s99, 1
    %s101 = scalar_select %p98, %s99, %s100
    %p104 = pneg %p98
    %p105 = scmp.eq.s32.totalorder %s8, 1
    %p106 = por %p104, %p105
    %p107 = scmp.ne.s32.totalorder %s99, %s102
    %p108 = scmp.eq.s32.totalorder %s8, 0
    %p109 = por %p107, %p108
    %p110 = scmp.ne.s32.totalorder %s99, %s102
    %p111 = scmp.eq.s32.totalorder %s13, 1
    %p112 = por %p110, %p111
    %p113 = scmp.ne.s32.totalorder %s102, %s103
    %p114 = scmp.eq.s32.totalorder %s13, 0
    %p115 = por %p113, %p114
    %p116 = scmp.ne.s32.totalorder %s102, %s103
    %p117 = scmp.eq.s32.totalorder %s14, 1
    %p118 = por %p116, %p117
    %p120 = scmp.ne.s32.totalorder %s103, %s119
    %p121 = scmp.eq.s32.totalorder %s14, 0
    %p122 = por %p120, %p121
    %p123 = scmp.le.s32.totalorder 1, %s8
    %p124 = scmp.lt.s32.totalorder %s8, 3
    %p125 = pnand %p123, %p124
    %p126 = pneg %p125
    // Predicated region
    $region9: #{dice_loss.1} parent=5 // pred_check
      _
    $region10: #{dice_loss.1} parent=5 // pred_check_branch
      %128 = sbr.rel (%p125) target = $region12
    $region11: #{dice_loss.1} parent=5 // pred_region
      %s129 = ssub.s32 %s8, 1
    $region12: #{dice_loss.1} parent=5 // pred_fallthru
      _
    %p130 = scmp.lt.s32.totalorder %s8, 2
    // Predicated region
    $region13: #{dice_loss.1} parent=5 // pred_check
      %p131 = pneg %p130
    $region14: #{dice_loss.1} parent=5 // pred_check_branch
      %133 = sbr.rel (%p131) target = $region16
    $region15: #{dice_loss.1} parent=5 // pred_region
      // Predicated region
      $region17: #{dice_loss.1} parent=15 // pred_check
        %p134 = pneg %p51
      $region18: #{dice_loss.1} parent=15 // pred_check_branch
        %136 = sbr.rel (%p134) target = $region20
      $region19: #{dice_loss.1} parent=15 // pred_region
        %s137 = sadd.s32 %s16, %s17
        %s138 = smul.u32 32, %s137
        %p139 = scmp.lt.s32.totalorder %s15, 1
        %s140 = scalar_select %p139, %s15, 1
        %p141 = scmp.lt.s32.totalorder %s138, 31
        %s142 = scalar_select %p141, %s138, 31
        %s143 = smul.addr %s140, 32
        %s144 = sadd.s32 %s142, %s143
        %s145 = smul.addr %s144, 4
        %s146 = scalar_lea.vmem %s0, %s145
        %s147 = sadd.s32 %s16, %s17
        %s148 = smul.u32 32, %s147
      $region20: #{dice_loss.1} parent=15 // pred_fallthru
        _
      // Predicated region
      $region21: #{dice_loss.1} parent=15 // pred_check
        %p149 = pneg %p81
      $region22: #{dice_loss.1} parent=15 // pred_check_branch
        %151 = sbr.rel (%p149) target = $region24
      $region23: #{dice_loss.1} parent=15 // pred_region
        %s152 = sadd.s32 %s16, %s17
        %s153 = smul.u32 32, %s152
        %p154 = scmp.lt.s32.totalorder %s15, 1
        %s155 = scalar_select %p154, %s15, 1
        %p156 = scmp.lt.s32.totalorder %s153, 31
        %s157 = scalar_select %p156, %s153, 31
        %s158 = smul.addr %s155, 32
        %s159 = sadd.s32 %s157, %s158
        %s160 = scalar_lea.vmem %s1, %s159
        %s161 = sadd.s32 %s16, %s17
        %s162 = smul.u32 32, %s161
      $region24: #{dice_loss.1} parent=15 // pred_fallthru
        _
    $region16: #{dice_loss.1} parent=5 // pred_fallthru
      _
    %p163 = scmp.le.s32.totalorder 1, %s8
    %p164 = scmp.lt.s32.totalorder %s8, 3
    %p165 = pnand %p163, %p164
    %p166 = pneg %p165
    // Predicated region
    $region25: #{dice_loss.1} parent=5 // pred_check
      _
    $region26: #{dice_loss.1} parent=5 // pred_check_branch
      %168 = sbr.rel (%p165) target = $region28
    $region27: #{dice_loss.1} parent=5 // pred_region
      %s169 = ssub.s32 %s8, 1
      %s170 = sadd.s32 %s19, %s20
      %s171 = smul.u32 32, %s170
      %p172 = scmp.lt.s32.totalorder %s18, 1
      %s173 = scalar_select %p172, %s18, 1
      %p174 = scmp.lt.s32.totalorder %s171, 31
      %s175 = scalar_select %p174, %s171, 31
      %s176 = smul.addr %s173, 32
      %s177 = sadd.s32 %s175, %s176
      %s178 = smul.addr %s177, 4
      %s179 = scalar_lea.vmem %s0, %s178
      %p180 = pneg %p57
      %p181 = pneg %p54
      %s182 = sadd.s32 %s19, %s20
      %s183 = smul.u32 32, %s182
      %p184 = scmp.lt.s32.totalorder %s18, 1
      %s185 = scalar_select %p184, %s18, 1
      %p186 = scmp.lt.s32.totalorder %s183, 31
      %s187 = scalar_select %p186, %s183, 31
      %s188 = smul.addr %s185, 32
      %s189 = sadd.s32 %s187, %s188
      %s190 = scalar_lea.vmem %s1, %s189
      %p191 = pneg %p87
      %p192 = pneg %p84
      %p193 = pneg %p115
      %p194 = pneg %p112
      %p195 = scmp.lt.s32.totalorder %s18, 1
      %s196 = scalar_select %p195, %s18, 1
      %p197 = scmp.lt.s32.totalorder %s19, 0
      %s198 = scalar_select %p197, %s19, 0
      %s199 = sadd.s32 %s198, %s196
      %s200 = smul.addr %s199, 4
      %s201 = scalar_lea.vmem %s2, %s200
      %s202 = sadd.s32 %s19, %s20
      %s203 = smul.u32 32, %s202
      %p204 = scmp.lt.s32.totalorder %s18, 1
      %s205 = scalar_select %p204, %s18, 1
      %p206 = scmp.lt.s32.totalorder %s203, 31
      %s207 = scalar_select %p206, %s203, 31
      %s208 = smul.addr %s205, 32
      %s209 = sadd.s32 %s207, %s208
      %s210 = smul.addr %s209, 4
      %s211 = scalar_lea.vmem %s0, %s210
      %s212 = sadd.s32 %s19, %s20
      %s213 = smul.u32 32, %s212
      %s214 = sadd.s32 %s19, %s20
      %s215 = smul.u32 32, %s214
      %p216 = scmp.lt.s32.totalorder %s18, 1
      %s217 = scalar_select %p216, %s18, 1
      %p218 = scmp.lt.s32.totalorder %s215, 31
      %s219 = scalar_select %p218, %s215, 31
      %s220 = smul.addr %s217, 32
      %s221 = sadd.s32 %s219, %s220
      %s222 = scalar_lea.vmem %s1, %s221
      %s223 = sadd.s32 %s19, %s20
      %s224 = smul.u32 32, %s223
      %p225 = scmp.lt.s32.totalorder %s18, 1
      %s226 = scalar_select %p225, %s18, 1
      %p227 = scmp.lt.s32.totalorder %s19, 0
      %s228 = scalar_select %p227, %s19, 0
      %s229 = sadd.s32 %s228, %s226
      %s230 = smul.addr %s229, 4
      %s231 = scalar_lea.vmem %s2, %s230
      %p232 = scmp.eq.s32.totalorder %s20, 0
      // Predicated region
      $region29: #{dice_loss.1} parent=27 // pred_check
        %p233 = pneg %p232
      $region30: #{dice_loss.1} parent=27 // pred_check_branch
        %235 = sbr.rel (%p233) target = $region32
      $region31: #{dice_loss.1} parent=27 // pred_region
        %236 = vst [vmem:[#allocation2] sm:$0xf] 0.0
        %237 = vst [vmem:[#allocation3] sm:$0xf] 0.0
        %238 = vst [vmem:[#allocation4] sm:$0xf] 0.0
      $region32: #{dice_loss.1} parent=27 // pred_fallthru
        _
      %v239 = vld [vmem:[%s211] sm:$0xff]
      %v240 = vld [vmem:[%s211 + $0x8] sm:$0xff]
      %v241 = vld [vmem:[%s211 + $0x10] sm:$0xff]
      %v242 = vld [vmem:[%s211 + $0x18] sm:$0xff]
      %v243 = vld [vmem:[%s211 + $0x20] sm:$0xff]
      %v244 = vld [vmem:[%s211 + $0x28] sm:$0xff]
      %v245 = vld [vmem:[%s211 + $0x30] sm:$0xff]
      %v246 = vld [vmem:[%s211 + $0x38] sm:$0xff]
      %v247 = vld [vmem:[%s211 + $0x40] sm:$0xff]
      %v248 = vld [vmem:[%s211 + $0x48] sm:$0xff]
      %v249 = vld [vmem:[%s211 + $0x50] sm:$0xff]
      %v250 = vld [vmem:[%s211 + $0x58] sm:$0xff]
      %v251 = vld [vmem:[%s211 + $0x60] sm:$0xff]
      %v252 = vld [vmem:[%s211 + $0x68] sm:$0xff]
      %v253 = vld [vmem:[%s211 + $0x70] sm:$0xff]
      %v254 = vld [vmem:[%s211 + $0x78] sm:$0xff]
      %v255 = vld [vmem:[%s222] sm:$0xff]
      %v256 = vld [vmem:[%s222 + $0x8] sm:$0xff]
      %v257 = vld [vmem:[%s222 + $0x10] sm:$0xff]
      %v258 = vld [vmem:[%s222 + $0x18] sm:$0xff]
      %v259 = vunpack.c.0.s8 %v255
      %v260 = vunpack.c.1.s8 %v255
      %v261 = vunpack.c.2.s8 %v255
      %v262 = vunpack.c.3.s8 %v255
      %v263 = vunpack.c.0.s8 %v256
      %v264 = vunpack.c.1.s8 %v256
      %v265 = vunpack.c.2.s8 %v256
      %v266 = vunpack.c.3.s8 %v256
      %v267 = vunpack.c.0.s8 %v257
      %v268 = vunpack.c.1.s8 %v257
      %v269 = vunpack.c.2.s8 %v257
      %v270 = vunpack.c.3.s8 %v257
      %v271 = vunpack.c.0.s8 %v258
      %v272 = vunpack.c.1.s8 %v258
      %v273 = vunpack.c.2.s8 %v258
      %v274 = vunpack.c.3.s8 %v258
      %v291 = vcombine.high %v239, %v239
      %v292 = vcombine.high %v240, %v240
      %v293 = vcombine.high %v241, %v241
      %v294 = vcombine.high %v242, %v242
      %v295 = vcombine.high %v243, %v243
      %v296 = vcombine.high %v244, %v244
      %v297 = vcombine.high %v245, %v245
      %v298 = vcombine.high %v246, %v246
      %v299 = vcombine.high %v247, %v247
      %v300 = vcombine.high %v248, %v248
      %v301 = vcombine.high %v249, %v249
      %v302 = vcombine.high %v250, %v250
      %v303 = vcombine.high %v251, %v251
      %v304 = vcombine.high %v252, %v252
      %v305 = vcombine.high %v253, %v253
      %v306 = vcombine.high %v254, %v254
      %vm323 = vcmask 1043456
      %v324 = vsel %vm323, %v239, -inf
      %v325 = vrot.slane %v324, 4
      %v326 = vmax.f32 %v324, %v325
      %v327 = vrot.slane %v326, 2
      %v328 = vmax.f32 %v326, %v327
      %v329 = vrot.slane %v328, 1
      %v330 = vmax.f32 %v328, %v329
      %v331 = vsel %vm323, %v291, -inf
      %v332 = vrot.slane %v331, 4
      %v333 = vmax.f32 %v331, %v332
      %v334 = vrot.slane %v333, 2
      %v335 = vmax.f32 %v333, %v334
      %v336 = vrot.slane %v335, 1
      %v337 = vmax.f32 %v335, %v336
      %v338 = vsel %vm323, %v240, -inf
      %v339 = vrot.slane %v338, 4
      %v340 = vmax.f32 %v338, %v339
      %v341 = vrot.slane %v340, 2
      %v342 = vmax.f32 %v340, %v341
      %v343 = vrot.slane %v342, 1
      %v344 = vmax.f32 %v342, %v343
      %v345 = vsel %vm323, %v292, -inf
      %v346 = vrot.slane %v345, 4
      %v347 = vmax.f32 %v345, %v346
      %v348 = vrot.slane %v347, 2
      %v349 = vmax.f32 %v347, %v348
      %v350 = vrot.slane %v349, 1
      %v351 = vmax.f32 %v349, %v350
      %v352 = vsel %vm323, %v241, -inf
      %v353 = vrot.slane %v352, 4
      %v354 = vmax.f32 %v352, %v353
      %v355 = vrot.slane %v354, 2
      %v356 = vmax.f32 %v354, %v355
      %v357 = vrot.slane %v356, 1
      %v358 = vmax.f32 %v356, %v357
      %v359 = vsel %vm323, %v293, -inf
      %v360 = vrot.slane %v359, 4
      %v361 = vmax.f32 %v359, %v360
      %v362 = vrot.slane %v361, 2
      %v363 = vmax.f32 %v361, %v362
      %v364 = vrot.slane %v363, 1
      %v365 = vmax.f32 %v363, %v364
      %v366 = vsel %vm323, %v242, -inf
      %v367 = vrot.slane %v366, 4
      %v368 = vmax.f32 %v366, %v367
      %v369 = vrot.slane %v368, 2
      %v370 = vmax.f32 %v368, %v369
      %v371 = vrot.slane %v370, 1
      %v372 = vmax.f32 %v370, %v371
      %v373 = vsel %vm323, %v294, -inf
      %v374 = vrot.slane %v373, 4
      %v375 = vmax.f32 %v373, %v374
      %v376 = vrot.slane %v375, 2
      %v377 = vmax.f32 %v375, %v376
      %v378 = vrot.slane %v377, 1
      %v379 = vmax.f32 %v377, %v378
      %v380 = vsel %vm323, %v243, -inf
      %v381 = vrot.slane %v380, 4
      %v382 = vmax.f32 %v380, %v381
      %v383 = vrot.slane %v382, 2
      %v384 = vmax.f32 %v382, %v383
      %v385 = vrot.slane %v384, 1
      %v386 = vmax.f32 %v384, %v385
      %v387 = vsel %vm323, %v295, -inf
      %v388 = vrot.slane %v387, 4
      %v389 = vmax.f32 %v387, %v388
      %v390 = vrot.slane %v389, 2
      %v391 = vmax.f32 %v389, %v390
      %v392 = vrot.slane %v391, 1
      %v393 = vmax.f32 %v391, %v392
      %v394 = vsel %vm323, %v244, -inf
      %v395 = vrot.slane %v394, 4
      %v396 = vmax.f32 %v394, %v395
      %v397 = vrot.slane %v396, 2
      %v398 = vmax.f32 %v396, %v397
      %v399 = vrot.slane %v398, 1
      %v400 = vmax.f32 %v398, %v399
      %v401 = vsel %vm323, %v296, -inf
      %v402 = vrot.slane %v401, 4
      %v403 = vmax.f32 %v401, %v402
      %v404 = vrot.slane %v403, 2
      %v405 = vmax.f32 %v403, %v404
      %v406 = vrot.slane %v405, 1
      %v407 = vmax.f32 %v405, %v406
      %v408 = vsel %vm323, %v245, -inf
      %v409 = vrot.slane %v408, 4
      %v410 = vmax.f32 %v408, %v409
      %v411 = vrot.slane %v410, 2
      %v412 = vmax.f32 %v410, %v411
      %v413 = vrot.slane %v412, 1
      %v414 = vmax.f32 %v412, %v413
      %v415 = vsel %vm323, %v297, -inf
      %v416 = vrot.slane %v415, 4
      %v417 = vmax.f32 %v415, %v416
      %v418 = vrot.slane %v417, 2
      %v419 = vmax.f32 %v417, %v418
      %v420 = vrot.slane %v419, 1
      %v421 = vmax.f32 %v419, %v420
      %v422 = vsel %vm323, %v246, -inf
      %v423 = vrot.slane %v422, 4
      %v424 = vmax.f32 %v422, %v423
      %v425 = vrot.slane %v424, 2
      %v426 = vmax.f32 %v424, %v425
      %v427 = vrot.slane %v426, 1
      %v428 = vmax.f32 %v426, %v427
      %v429 = vsel %vm323, %v298, -inf
      %v430 = vrot.slane %v429, 4
      %v431 = vmax.f32 %v429, %v430
      %v432 = vrot.slane %v431, 2
      %v433 = vmax.f32 %v431, %v432
      %v434 = vrot.slane %v433, 1
      %v435 = vmax.f32 %v433, %v434
      %v436 = vsel %vm323, %v247, -inf
      %v437 = vrot.slane %v436, 4
      %v438 = vmax.f32 %v436, %v437
      %v439 = vrot.slane %v438, 2
      %v440 = vmax.f32 %v438, %v439
      %v441 = vrot.slane %v440, 1
      %v442 = vmax.f32 %v440, %v441
      %v443 = vsel %vm323, %v299, -inf
      %v444 = vrot.slane %v443, 4
      %v445 = vmax.f32 %v443, %v444
      %v446 = vrot.slane %v445, 2
      %v447 = vmax.f32 %v445, %v446
      %v448 = vrot.slane %v447, 1
      %v449 = vmax.f32 %v447, %v448
      %v450 = vsel %vm323, %v248, -inf
      %v451 = vrot.slane %v450, 4
      %v452 = vmax.f32 %v450, %v451
      %v453 = vrot.slane %v452, 2
      %v454 = vmax.f32 %v452, %v453
      %v455 = vrot.slane %v454, 1
      %v456 = vmax.f32 %v454, %v455
      %v457 = vsel %vm323, %v300, -inf
      %v458 = vrot.slane %v457, 4
      %v459 = vmax.f32 %v457, %v458
      %v460 = vrot.slane %v459, 2
      %v461 = vmax.f32 %v459, %v460
      %v462 = vrot.slane %v461, 1
      %v463 = vmax.f32 %v461, %v462
      %v464 = vsel %vm323, %v249, -inf
      %v465 = vrot.slane %v464, 4
      %v466 = vmax.f32 %v464, %v465
      %v467 = vrot.slane %v466, 2
      %v468 = vmax.f32 %v466, %v467
      %v469 = vrot.slane %v468, 1
      %v470 = vmax.f32 %v468, %v469
      %v471 = vsel %vm323, %v301, -inf
      %v472 = vrot.slane %v471, 4
      %v473 = vmax.f32 %v471, %v472
      %v474 = vrot.slane %v473, 2
      %v475 = vmax.f32 %v473, %v474
      %v476 = vrot.slane %v475, 1
      %v477 = vmax.f32 %v475, %v476
      %v478 = vsel %vm323, %v250, -inf
      %v479 = vrot.slane %v478, 4
      %v480 = vmax.f32 %v478, %v479
      %v481 = vrot.slane %v480, 2
      %v482 = vmax.f32 %v480, %v481
      %v483 = vrot.slane %v482, 1
      %v484 = vmax.f32 %v482, %v483
      %v485 = vsel %vm323, %v302, -inf
      %v486 = vrot.slane %v485, 4
      %v487 = vmax.f32 %v485, %v486
      %v488 = vrot.slane %v487, 2
      %v489 = vmax.f32 %v487, %v488
      %v490 = vrot.slane %v489, 1
      %v491 = vmax.f32 %v489, %v490
      %v492 = vsel %vm323, %v251, -inf
      %v493 = vrot.slane %v492, 4
      %v494 = vmax.f32 %v492, %v493
      %v495 = vrot.slane %v494, 2
      %v496 = vmax.f32 %v494, %v495
      %v497 = vrot.slane %v496, 1
      %v498 = vmax.f32 %v496, %v497
      %v499 = vsel %vm323, %v303, -inf
      %v500 = vrot.slane %v499, 4
      %v501 = vmax.f32 %v499, %v500
      %v502 = vrot.slane %v501, 2
      %v503 = vmax.f32 %v501, %v502
      %v504 = vrot.slane %v503, 1
      %v505 = vmax.f32 %v503, %v504
      %v506 = vsel %vm323, %v252, -inf
      %v507 = vrot.slane %v506, 4
      %v508 = vmax.f32 %v506, %v507
      %v509 = vrot.slane %v508, 2
      %v510 = vmax.f32 %v508, %v509
      %v511 = vrot.slane %v510, 1
      %v512 = vmax.f32 %v510, %v511
      %v513 = vsel %vm323, %v304, -inf
      %v514 = vrot.slane %v513, 4
      %v515 = vmax.f32 %v513, %v514
      %v516 = vrot.slane %v515, 2
      %v517 = vmax.f32 %v515, %v516
      %v518 = vrot.slane %v517, 1
      %v519 = vmax.f32 %v517, %v518
      %v520 = vsel %vm323, %v253, -inf
      %v521 = vrot.slane %v520, 4
      %v522 = vmax.f32 %v520, %v521
      %v523 = vrot.slane %v522, 2
      %v524 = vmax.f32 %v522, %v523
      %v525 = vrot.slane %v524, 1
      %v526 = vmax.f32 %v524, %v525
      %v527 = vsel %vm323, %v305, -inf
      %v528 = vrot.slane %v527, 4
      %v529 = vmax.f32 %v527, %v528
      %v530 = vrot.slane %v529, 2
      %v531 = vmax.f32 %v529, %v530
      %v532 = vrot.slane %v531, 1
      %v533 = vmax.f32 %v531, %v532
      %v534 = vsel %vm323, %v254, -inf
      %v535 = vrot.slane %v534, 4
      %v536 = vmax.f32 %v534, %v535
      %v537 = vrot.slane %v536, 2
      %v538 = vmax.f32 %v536, %v537
      %v539 = vrot.slane %v538, 1
      %v540 = vmax.f32 %v538, %v539
      %v541 = vsel %vm323, %v306, -inf
      %v542 = vrot.slane %v541, 4
      %v543 = vmax.f32 %v541, %v542
      %v544 = vrot.slane %v543, 2
      %v545 = vmax.f32 %v543, %v544
      %v546 = vrot.slane %v545, 1
      %v547 = vmax.f32 %v545, %v546
      %v580 = vcombine.low %v330, %v337
      %v581 = vcombine.low %v344, %v351
      %v582 = vcombine.low %v358, %v365
      %v583 = vcombine.low %v372, %v379
      %v584 = vcombine.low %v386, %v393
      %v585 = vcombine.low %v400, %v407
      %v586 = vcombine.low %v414, %v421
      %v587 = vcombine.low %v428, %v435
      %v588 = vcombine.low %v442, %v449
      %v589 = vcombine.low %v456, %v463
      %v590 = vcombine.low %v470, %v477
      %v591 = vcombine.low %v484, %v491
      %v592 = vcombine.low %v498, %v505
      %v593 = vcombine.low %v512, %v519
      %v594 = vcombine.low %v526, %v533
      %v595 = vcombine.low %v540, %v547
      %v612 = vsub.f32 %v239, %v580
      %v613 = vsub.f32 %v240, %v581
      %v614 = vsub.f32 %v241, %v582
      %v615 = vsub.f32 %v242, %v583
      %v616 = vsub.f32 %v243, %v584
      %v617 = vsub.f32 %v244, %v585
      %v618 = vsub.f32 %v245, %v586
      %v619 = vsub.f32 %v246, %v587
      %v620 = vsub.f32 %v247, %v588
      %v621 = vsub.f32 %v248, %v589
      %v622 = vsub.f32 %v249, %v590
      %v623 = vsub.f32 %v250, %v591
      %v624 = vsub.f32 %v251, %v592
      %v625 = vsub.f32 %v252, %v593
      %v626 = vsub.f32 %v253, %v594
      %v627 = vsub.f32 %v254, %v595
      %v628 = vmul.f32 %v612, 1.442695
      %v629 = vpow.pop %v628
      %v630 = vmul.f32 %v613, 1.442695
      %v631 = vpow.pop %v630
      %v632 = vmul.f32 %v614, 1.442695
      %v633 = vpow.pop %v632
      %v634 = vmul.f32 %v615, 1.442695
      %v635 = vpow.pop %v634
      %v636 = vmul.f32 %v616, 1.442695
      %v637 = vpow.pop %v636
      %v638 = vmul.f32 %v617, 1.442695
      %v639 = vpow.pop %v638
      %v640 = vmul.f32 %v618, 1.442695
      %v641 = vpow.pop %v640
      %v642 = vmul.f32 %v619, 1.442695
      %v643 = vpow.pop %v642
      %v644 = vmul.f32 %v620, 1.442695
      %v645 = vpow.pop %v644
      %v646 = vmul.f32 %v621, 1.442695
      %v647 = vpow.pop %v646
      %v648 = vmul.f32 %v622, 1.442695
      %v649 = vpow.pop %v648
      %v650 = vmul.f32 %v623, 1.442695
      %v651 = vpow.pop %v650
      %v652 = vmul.f32 %v624, 1.442695
      %v653 = vpow.pop %v652
      %v654 = vmul.f32 %v625, 1.442695
      %v655 = vpow.pop %v654
      %v656 = vmul.f32 %v626, 1.442695
      %v657 = vpow.pop %v656
      %v658 = vmul.f32 %v627, 1.442695
      %v659 = vpow.pop %v658
      %v676 = vcombine.high %v629, %v629
      %v677 = vcombine.high %v631, %v631
      %v678 = vcombine.high %v633, %v633
      %v679 = vcombine.high %v635, %v635
      %v680 = vcombine.high %v637, %v637
      %v681 = vcombine.high %v639, %v639
      %v682 = vcombine.high %v641, %v641
      %v683 = vcombine.high %v643, %v643
      %v684 = vcombine.high %v645, %v645
      %v685 = vcombine.high %v647, %v647
      %v686 = vcombine.high %v649, %v649
      %v687 = vcombine.high %v651, %v651
      %v688 = vcombine.high %v653, %v653
      %v689 = vcombine.high %v655, %v655
      %v690 = vcombine.high %v657, %v657
      %v691 = vcombine.high %v659, %v659
      %v708 = vsel %vm323, %v629, 0.0
      %v709 = vrot.slane %v708, 4
      %v710 = vadd.f32 %v708, %v709
      %v711 = vrot.slane %v710, 2
      %v712 = vadd.f32 %v710, %v711
      %v713 = vrot.slane %v712, 1
      %v714 = vadd.f32 %v712, %v713
      %v715 = vsel %vm323, %v676, 0.0
      %v716 = vrot.slane %v715, 4
      %v717 = vadd.f32 %v715, %v716
      %v718 = vrot.slane %v717, 2
      %v719 = vadd.f32 %v717, %v718
      %v720 = vrot.slane %v719, 1
      %v721 = vadd.f32 %v719, %v720
      %v722 = vsel %vm323, %v631, 0.0
      %v723 = vrot.slane %v722, 4
      %v724 = vadd.f32 %v722, %v723
      %v725 = vrot.slane %v724, 2
      %v726 = vadd.f32 %v724, %v725
      %v727 = vrot.slane %v726, 1
      %v728 = vadd.f32 %v726, %v727
      %v729 = vsel %vm323, %v677, 0.0
      %v730 = vrot.slane %v729, 4
      %v731 = vadd.f32 %v729, %v730
      %v732 = vrot.slane %v731, 2
      %v733 = vadd.f32 %v731, %v732
      %v734 = vrot.slane %v733, 1
      %v735 = vadd.f32 %v733, %v734
      %v736 = vsel %vm323, %v633, 0.0
      %v737 = vrot.slane %v736, 4
      %v738 = vadd.f32 %v736, %v737
      %v739 = vrot.slane %v738, 2
      %v740 = vadd.f32 %v738, %v739
      %v741 = vrot.slane %v740, 1
      %v742 = vadd.f32 %v740, %v741
      %v743 = vsel %vm323, %v678, 0.0
      %v744 = vrot.slane %v743, 4
      %v745 = vadd.f32 %v743, %v744
      %v746 = vrot.slane %v745, 2
      %v747 = vadd.f32 %v745, %v746
      %v748 = vrot.slane %v747, 1
      %v749 = vadd.f32 %v747, %v748
      %v750 = vsel %vm323, %v635, 0.0
      %v751 = vrot.slane %v750, 4
      %v752 = vadd.f32 %v750, %v751
      %v753 = vrot.slane %v752, 2
      %v754 = vadd.f32 %v752, %v753
      %v755 = vrot.slane %v754, 1
      %v756 = vadd.f32 %v754, %v755
      %v757 = vsel %vm323, %v679, 0.0
      %v758 = vrot.slane %v757, 4
      %v759 = vadd.f32 %v757, %v758
      %v760 = vrot.slane %v759, 2
      %v761 = vadd.f32 %v759, %v760
      %v762 = vrot.slane %v761, 1
      %v763 = vadd.f32 %v761, %v762
      %v764 = vsel %vm323, %v637, 0.0
      %v765 = vrot.slane %v764, 4
      %v766 = vadd.f32 %v764, %v765
      %v767 = vrot.slane %v766, 2
      %v768 = vadd.f32 %v766, %v767
      %v769 = vrot.slane %v768, 1
      %v770 = vadd.f32 %v768, %v769
      %v771 = vsel %vm323, %v680, 0.0
      %v772 = vrot.slane %v771, 4
      %v773 = vadd.f32 %v771, %v772
      %v774 = vrot.slane %v773, 2
      %v775 = vadd.f32 %v773, %v774
      %v776 = vrot.slane %v775, 1
      %v777 = vadd.f32 %v775, %v776
      %v778 = vsel %vm323, %v639, 0.0
      %v779 = vrot.slane %v778, 4
      %v780 = vadd.f32 %v778, %v779
      %v781 = vrot.slane %v780, 2
      %v782 = vadd.f32 %v780, %v781
      %v783 = vrot.slane %v782, 1
      %v784 = vadd.f32 %v782, %v783
      %v785 = vsel %vm323, %v681, 0.0
      %v786 = vrot.slane %v785, 4
      %v787 = vadd.f32 %v785, %v786
      %v788 = vrot.slane %v787, 2
      %v789 = vadd.f32 %v787, %v788
      %v790 = vrot.slane %v789, 1
      %v791 = vadd.f32 %v789, %v790
      %v792 = vsel %vm323, %v641, 0.0
      %v793 = vrot.slane %v792, 4
      %v794 = vadd.f32 %v792, %v793
      %v795 = vrot.slane %v794, 2
      %v796 = vadd.f32 %v794, %v795
      %v797 = vrot.slane %v796, 1
      %v798 = vadd.f32 %v796, %v797
      %v799 = vsel %vm323, %v682, 0.0
      %v800 = vrot.slane %v799, 4
      %v801 = vadd.f32 %v799, %v800
      %v802 = vrot.slane %v801, 2
      %v803 = vadd.f32 %v801, %v802
      %v804 = vrot.slane %v803, 1
      %v805 = vadd.f32 %v803, %v804
      %v806 = vsel %vm323, %v643, 0.0
      %v807 = vrot.slane %v806, 4
      %v808 = vadd.f32 %v806, %v807
      %v809 = vrot.slane %v808, 2
      %v810 = vadd.f32 %v808, %v809
      %v811 = vrot.slane %v810, 1
      %v812 = vadd.f32 %v810, %v811
      %v813 = vsel %vm323, %v683, 0.0
      %v814 = vrot.slane %v813, 4
      %v815 = vadd.f32 %v813, %v814
      %v816 = vrot.slane %v815, 2
      %v817 = vadd.f32 %v815, %v816
      %v818 = vrot.slane %v817, 1
      %v819 = vadd.f32 %v817, %v818
      %v820 = vsel %vm323, %v645, 0.0
      %v821 = vrot.slane %v820, 4
      %v822 = vadd.f32 %v820, %v821
      %v823 = vrot.slane %v822, 2
      %v824 = vadd.f32 %v822, %v823
      %v825 = vrot.slane %v824, 1
      %v826 = vadd.f32 %v824, %v825
      %v827 = vsel %vm323, %v684, 0.0
      %v828 = vrot.slane %v827, 4
      %v829 = vadd.f32 %v827, %v828
      %v830 = vrot.slane %v829, 2
      %v831 = vadd.f32 %v829, %v830
      %v832 = vrot.slane %v831, 1
      %v833 = vadd.f32 %v831, %v832
      %v834 = vsel %vm323, %v647, 0.0
      %v835 = vrot.slane %v834, 4
      %v836 = vadd.f32 %v834, %v835
      %v837 = vrot.slane %v836, 2
      %v838 = vadd.f32 %v836, %v837
      %v839 = vrot.slane %v838, 1
      %v840 = vadd.f32 %v838, %v839
      %v841 = vsel %vm323, %v685, 0.0
      %v842 = vrot.slane %v841, 4
      %v843 = vadd.f32 %v841, %v842
      %v844 = vrot.slane %v843, 2
      %v845 = vadd.f32 %v843, %v844
      %v846 = vrot.slane %v845, 1
      %v847 = vadd.f32 %v845, %v846
      %v848 = vsel %vm323, %v649, 0.0
      %v849 = vrot.slane %v848, 4
      %v850 = vadd.f32 %v848, %v849
      %v851 = vrot.slane %v850, 2
      %v852 = vadd.f32 %v850, %v851
      %v853 = vrot.slane %v852, 1
      %v854 = vadd.f32 %v852, %v853
      %v855 = vsel %vm323, %v686, 0.0
      %v856 = vrot.slane %v855, 4
      %v857 = vadd.f32 %v855, %v856
      %v858 = vrot.slane %v857, 2
      %v859 = vadd.f32 %v857, %v858
      %v860 = vrot.slane %v859, 1
      %v861 = vadd.f32 %v859, %v860
      %v862 = vsel %vm323, %v651, 0.0
      %v863 = vrot.slane %v862, 4
      %v864 = vadd.f32 %v862, %v863
      %v865 = vrot.slane %v864, 2
      %v866 = vadd.f32 %v864, %v865
      %v867 = vrot.slane %v866, 1
      %v868 = vadd.f32 %v866, %v867
      %v869 = vsel %vm323, %v687, 0.0
      %v870 = vrot.slane %v869, 4
      %v871 = vadd.f32 %v869, %v870
      %v872 = vrot.slane %v871, 2
      %v873 = vadd.f32 %v871, %v872
      %v874 = vrot.slane %v873, 1
      %v875 = vadd.f32 %v873, %v874
      %v876 = vsel %vm323, %v653, 0.0
      %v877 = vrot.slane %v876, 4
      %v878 = vadd.f32 %v876, %v877
      %v879 = vrot.slane %v878, 2
      %v880 = vadd.f32 %v878, %v879
      %v881 = vrot.slane %v880, 1
      %v882 = vadd.f32 %v880, %v881
      %v883 = vsel %vm323, %v688, 0.0
      %v884 = vrot.slane %v883, 4
      %v885 = vadd.f32 %v883, %v884
      %v886 = vrot.slane %v885, 2
      %v887 = vadd.f32 %v885, %v886
      %v888 = vrot.slane %v887, 1
      %v889 = vadd.f32 %v887, %v888
      %v890 = vsel %vm323, %v655, 0.0
      %v891 = vrot.slane %v890, 4
      %v892 = vadd.f32 %v890, %v891
      %v893 = vrot.slane %v892, 2
      %v894 = vadd.f32 %v892, %v893
      %v895 = vrot.slane %v894, 1
      %v896 = vadd.f32 %v894, %v895
      %v897 = vsel %vm323, %v689, 0.0
      %v898 = vrot.slane %v897, 4
      %v899 = vadd.f32 %v897, %v898
      %v900 = vrot.slane %v899, 2
      %v901 = vadd.f32 %v899, %v900
      %v902 = vrot.slane %v901, 1
      %v903 = vadd.f32 %v901, %v902
      %v904 = vsel %vm323, %v657, 0.0
      %v905 = vrot.slane %v904, 4
      %v906 = vadd.f32 %v904, %v905
      %v907 = vrot.slane %v906, 2
      %v908 = vadd.f32 %v906, %v907
      %v909 = vrot.slane %v908, 1
      %v910 = vadd.f32 %v908, %v909
      %v911 = vsel %vm323, %v690, 0.0
      %v912 = vrot.slane %v911, 4
      %v913 = vadd.f32 %v911, %v912
      %v914 = vrot.slane %v913, 2
      %v915 = vadd.f32 %v913, %v914
      %v916 = vrot.slane %v915, 1
      %v917 = vadd.f32 %v915, %v916
      %v918 = vsel %vm323, %v659, 0.0
      %v919 = vrot.slane %v918, 4
      %v920 = vadd.f32 %v918, %v919
      %v921 = vrot.slane %v920, 2
      %v922 = vadd.f32 %v920, %v921
      %v923 = vrot.slane %v922, 1
      %v924 = vadd.f32 %v922, %v923
      %v925 = vsel %vm323, %v691, 0.0
      %v926 = vrot.slane %v925, 4
      %v927 = vadd.f32 %v925, %v926
      %v928 = vrot.slane %v927, 2
      %v929 = vadd.f32 %v927, %v928
      %v930 = vrot.slane %v929, 1
      %v931 = vadd.f32 %v929, %v930
      %v932 = vrcp.pop %v714
      %v933 = vrcp.pop %v721
      %v934 = vrcp.pop %v728
      %v935 = vrcp.pop %v735
      %v936 = vrcp.pop %v742
      %v937 = vrcp.pop %v749
      %v938 = vrcp.pop %v756
      %v939 = vrcp.pop %v763
      %v940 = vrcp.pop %v770
      %v941 = vrcp.pop %v777
      %v942 = vrcp.pop %v784
      %v943 = vrcp.pop %v791
      %v944 = vrcp.pop %v798
      %v945 = vrcp.pop %v805
      %v946 = vrcp.pop %v812
      %v947 = vrcp.pop %v819
      %v948 = vrcp.pop %v826
      %v949 = vrcp.pop %v833
      %v950 = vrcp.pop %v840
      %v951 = vrcp.pop %v847
      %v952 = vrcp.pop %v854
      %v953 = vrcp.pop %v861
      %v954 = vrcp.pop %v868
      %v955 = vrcp.pop %v875
      %v956 = vrcp.pop %v882
      %v957 = vrcp.pop %v889
      %v958 = vrcp.pop %v896
      %v959 = vrcp.pop %v903
      %v960 = vrcp.pop %v910
      %v961 = vrcp.pop %v917
      %v962 = vrcp.pop %v924
      %v963 = vrcp.pop %v931
      %v996 = vcombine.low %v932, %v933
      %v997 = vcombine.low %v934, %v935
      %v998 = vcombine.low %v936, %v937
      %v999 = vcombine.low %v938, %v939
      %v1000 = vcombine.low %v940, %v941
      %v1001 = vcombine.low %v942, %v943
      %v1002 = vcombine.low %v944, %v945
      %v1003 = vcombine.low %v946, %v947
      %v1004 = vcombine.low %v948, %v949
      %v1005 = vcombine.low %v950, %v951
      %v1006 = vcombine.low %v952, %v953
      %v1007 = vcombine.low %v954, %v955
      %v1008 = vcombine.low %v956, %v957
      %v1009 = vcombine.low %v958, %v959
      %v1010 = vcombine.low %v960, %v961
      %v1011 = vcombine.low %v962, %v963
      %v1028 = vmul.f32 %v629, %v996
      %v1029 = vmul.f32 %v631, %v997
      %v1030 = vmul.f32 %v633, %v998
      %v1031 = vmul.f32 %v635, %v999
      %v1032 = vmul.f32 %v637, %v1000
      %v1033 = vmul.f32 %v639, %v1001
      %v1034 = vmul.f32 %v641, %v1002
      %v1035 = vmul.f32 %v643, %v1003
      %v1036 = vmul.f32 %v645, %v1004
      %v1037 = vmul.f32 %v647, %v1005
      %v1038 = vmul.f32 %v649, %v1006
      %v1039 = vmul.f32 %v651, %v1007
      %v1040 = vmul.f32 %v653, %v1008
      %v1041 = vmul.f32 %v655, %v1009
      %v1042 = vmul.f32 %v657, %v1010
      %v1043 = vmul.f32 %v659, %v1011
      %v1044 = vlaneseq
      %v1045 = vshrl.u32 %v1044, 7
      %v1046 = vlaneseq
      %v1047 = vshrl.u32 %v1046, 7
      %v1048 = vsub.s32 0, %v1047
      %v1049 = vrot.slane %v259, %v1048
      %v1050 = vlaneseq
      %v1051 = vshrl.u32 %v1050, 7
      %v1052 = vsub.s32 4, %v1051
      %v1053 = vrot.slane %v259, %v1052
      %v1054 = vlaneseq
      %v1055 = vshrl.u32 %v1054, 7
      %v1056 = vsub.s32 0, %v1055
      %v1057 = vrot.slane %v260, %v1056
      %v1058 = vlaneseq
      %v1059 = vshrl.u32 %v1058, 7
      %v1060 = vsub.s32 4, %v1059
      %v1061 = vrot.slane %v260, %v1060
      %v1062 = vlaneseq
      %v1063 = vshrl.u32 %v1062, 7
      %v1064 = vsub.s32 0, %v1063
      %v1065 = vrot.slane %v261, %v1064
      %v1066 = vlaneseq
      %v1067 = vshrl.u32 %v1066, 7
      %v1068 = vsub.s32 4, %v1067
      %v1069 = vrot.slane %v261, %v1068
      %v1070 = vlaneseq
      %v1071 = vshrl.u32 %v1070, 7
      %v1072 = vsub.s32 0, %v1071
      %v1073 = vrot.slane %v262, %v1072
      %v1074 = vlaneseq
      %v1075 = vshrl.u32 %v1074, 7
      %v1076 = vsub.s32 4, %v1075
      %v1077 = vrot.slane %v262, %v1076
      %v1078 = vlaneseq
      %v1079 = vshrl.u32 %v1078, 7
      %v1080 = vsub.s32 0, %v1079
      %v1081 = vrot.slane %v263, %v1080
      %v1082 = vlaneseq
      %v1083 = vshrl.u32 %v1082, 7
      %v1084 = vsub.s32 4, %v1083
      %v1085 = vrot.slane %v263, %v1084
      %v1086 = vlaneseq
      %v1087 = vshrl.u32 %v1086, 7
      %v1088 = vsub.s32 0, %v1087
      %v1089 = vrot.slane %v264, %v1088
      %v1090 = vlaneseq
      %v1091 = vshrl.u32 %v1090, 7
      %v1092 = vsub.s32 4, %v1091
      %v1093 = vrot.slane %v264, %v1092
      %v1094 = vlaneseq
      %v1095 = vshrl.u32 %v1094, 7
      %v1096 = vsub.s32 0, %v1095
      %v1097 = vrot.slane %v265, %v1096
      %v1098 = vlaneseq
      %v1099 = vshrl.u32 %v1098, 7
      %v1100 = vsub.s32 4, %v1099
      %v1101 = vrot.slane %v265, %v1100
      %v1102 = vlaneseq
      %v1103 = vshrl.u32 %v1102, 7
      %v1104 = vsub.s32 0, %v1103
      %v1105 = vrot.slane %v266, %v1104
      %v1106 = vlaneseq
      %v1107 = vshrl.u32 %v1106, 7
      %v1108 = vsub.s32 4, %v1107
      %v1109 = vrot.slane %v266, %v1108
      %v1110 = vlaneseq
      %v1111 = vshrl.u32 %v1110, 7
      %v1112 = vsub.s32 0, %v1111
      %v1113 = vrot.slane %v267, %v1112
      %v1114 = vlaneseq
      %v1115 = vshrl.u32 %v1114, 7
      %v1116 = vsub.s32 4, %v1115
      %v1117 = vrot.slane %v267, %v1116
      %v1118 = vlaneseq
      %v1119 = vshrl.u32 %v1118, 7
      %v1120 = vsub.s32 0, %v1119
      %v1121 = vrot.slane %v268, %v1120
      %v1122 = vlaneseq
      %v1123 = vshrl.u32 %v1122, 7
      %v1124 = vsub.s32 4, %v1123
      %v1125 = vrot.slane %v268, %v1124
      %v1126 = vlaneseq
      %v1127 = vshrl.u32 %v1126, 7
      %v1128 = vsub.s32 0, %v1127
      %v1129 = vrot.slane %v269, %v1128
      %v1130 = vlaneseq
      %v1131 = vshrl.u32 %v1130, 7
      %v1132 = vsub.s32 4, %v1131
      %v1133 = vrot.slane %v269, %v1132
      %v1134 = vlaneseq
      %v1135 = vshrl.u32 %v1134, 7
      %v1136 = vsub.s32 0, %v1135
      %v1137 = vrot.slane %v270, %v1136
      %v1138 = vlaneseq
      %v1139 = vshrl.u32 %v1138, 7
      %v1140 = vsub.s32 4, %v1139
      %v1141 = vrot.slane %v270, %v1140
      %v1142 = vlaneseq
      %v1143 = vshrl.u32 %v1142, 7
      %v1144 = vsub.s32 0, %v1143
      %v1145 = vrot.slane %v271, %v1144
      %v1146 = vlaneseq
      %v1147 = vshrl.u32 %v1146, 7
      %v1148 = vsub.s32 4, %v1147
      %v1149 = vrot.slane %v271, %v1148
      %v1150 = vlaneseq
      %v1151 = vshrl.u32 %v1150, 7
      %v1152 = vsub.s32 0, %v1151
      %v1153 = vrot.slane %v272, %v1152
      %v1154 = vlaneseq
      %v1155 = vshrl.u32 %v1154, 7
      %v1156 = vsub.s32 4, %v1155
      %v1157 = vrot.slane %v272, %v1156
      %v1158 = vlaneseq
      %v1159 = vshrl.u32 %v1158, 7
      %v1160 = vsub.s32 0, %v1159
      %v1161 = vrot.slane %v273, %v1160
      %v1162 = vlaneseq
      %v1163 = vshrl.u32 %v1162, 7
      %v1164 = vsub.s32 4, %v1163
      %v1165 = vrot.slane %v273, %v1164
      %v1166 = vlaneseq
      %v1167 = vshrl.u32 %v1166, 7
      %v1168 = vsub.s32 0, %v1167
      %v1169 = vrot.slane %v274, %v1168
      %v1170 = vlaneseq
      %v1171 = vshrl.u32 %v1170, 7
      %v1172 = vsub.s32 4, %v1171
      %v1173 = vrot.slane %v274, %v1172
      %v1174 = vlaneseq
      %v1175 = vshrl.u32 %v1174, 7
      %v1176 = vsub.s32 0, %v1175
      %v1177 = vrot.slane %v1049, %v1176
      %v1178 = vlaneseq
      %v1179 = vshrl.u32 %v1178, 7
      %v1180 = vsub.s32 0, %v1179
      %v1181 = vrot.slane %v1053, %v1180
      %v1182 = vlaneseq
      %v1183 = vshrl.u32 %v1182, 7
      %v1184 = vsub.s32 0, %v1183
      %v1185 = vrot.slane %v1057, %v1184
      %v1186 = vlaneseq
      %v1187 = vshrl.u32 %v1186, 7
      %v1188 = vsub.s32 0, %v1187
      %v1189 = vrot.slane %v1061, %v1188
      %v1190 = vlaneseq
      %v1191 = vshrl.u32 %v1190, 7
      %v1192 = vsub.s32 0, %v1191
      %v1193 = vrot.slane %v1065, %v1192
      %v1194 = vlaneseq
      %v1195 = vshrl.u32 %v1194, 7
      %v1196 = vsub.s32 0, %v1195
      %v1197 = vrot.slane %v1069, %v1196
      %v1198 = vlaneseq
      %v1199 = vshrl.u32 %v1198, 7
      %v1200 = vsub.s32 0, %v1199
      %v1201 = vrot.slane %v1073, %v1200
      %v1202 = vlaneseq
      %v1203 = vshrl.u32 %v1202, 7
      %v1204 = vsub.s32 0, %v1203
      %v1205 = vrot.slane %v1077, %v1204
      %v1206 = vlaneseq
      %v1207 = vshrl.u32 %v1206, 7
      %v1208 = vsub.s32 0, %v1207
      %v1209 = vrot.slane %v1081, %v1208
      %v1210 = vlaneseq
      %v1211 = vshrl.u32 %v1210, 7
      %v1212 = vsub.s32 0, %v1211
      %v1213 = vrot.slane %v1085, %v1212
      %v1214 = vlaneseq
      %v1215 = vshrl.u32 %v1214, 7
      %v1216 = vsub.s32 0, %v1215
      %v1217 = vrot.slane %v1089, %v1216
      %v1218 = vlaneseq
      %v1219 = vshrl.u32 %v1218, 7
      %v1220 = vsub.s32 0, %v1219
      %v1221 = vrot.slane %v1093, %v1220
      %v1222 = vlaneseq
      %v1223 = vshrl.u32 %v1222, 7
      %v1224 = vsub.s32 0, %v1223
      %v1225 = vrot.slane %v1097, %v1224
      %v1226 = vlaneseq
      %v1227 = vshrl.u32 %v1226, 7
      %v1228 = vsub.s32 0, %v1227
      %v1229 = vrot.slane %v1101, %v1228
      %v1230 = vlaneseq
      %v1231 = vshrl.u32 %v1230, 7
      %v1232 = vsub.s32 0, %v1231
      %v1233 = vrot.slane %v1105, %v1232
      %v1234 = vlaneseq
      %v1235 = vshrl.u32 %v1234, 7
      %v1236 = vsub.s32 0, %v1235
      %v1237 = vrot.slane %v1109, %v1236
      %v1238 = vlaneseq
      %v1239 = vshrl.u32 %v1238, 7
      %v1240 = vsub.s32 0, %v1239
      %v1241 = vrot.slane %v1113, %v1240
      %v1242 = vlaneseq
      %v1243 = vshrl.u32 %v1242, 7
      %v1244 = vsub.s32 0, %v1243
      %v1245 = vrot.slane %v1117, %v1244
      %v1246 = vlaneseq
      %v1247 = vshrl.u32 %v1246, 7
      %v1248 = vsub.s32 0, %v1247
      %v1249 = vrot.slane %v1121, %v1248
      %v1250 = vlaneseq
      %v1251 = vshrl.u32 %v1250, 7
      %v1252 = vsub.s32 0, %v1251
      %v1253 = vrot.slane %v1125, %v1252
      %v1254 = vlaneseq
      %v1255 = vshrl.u32 %v1254, 7
      %v1256 = vsub.s32 0, %v1255
      %v1257 = vrot.slane %v1129, %v1256
      %v1258 = vlaneseq
      %v1259 = vshrl.u32 %v1258, 7
      %v1260 = vsub.s32 0, %v1259
      %v1261 = vrot.slane %v1133, %v1260
      %v1262 = vlaneseq
      %v1263 = vshrl.u32 %v1262, 7
      %v1264 = vsub.s32 0, %v1263
      %v1265 = vrot.slane %v1137, %v1264
      %v1266 = vlaneseq
      %v1267 = vshrl.u32 %v1266, 7
      %v1268 = vsub.s32 0, %v1267
      %v1269 = vrot.slane %v1141, %v1268
      %v1270 = vlaneseq
      %v1271 = vshrl.u32 %v1270, 7
      %v1272 = vsub.s32 0, %v1271
      %v1273 = vrot.slane %v1145, %v1272
      %v1274 = vlaneseq
      %v1275 = vshrl.u32 %v1274, 7
      %v1276 = vsub.s32 0, %v1275
      %v1277 = vrot.slane %v1149, %v1276
      %v1278 = vlaneseq
      %v1279 = vshrl.u32 %v1278, 7
      %v1280 = vsub.s32 0, %v1279
      %v1281 = vrot.slane %v1153, %v1280
      %v1282 = vlaneseq
      %v1283 = vshrl.u32 %v1282, 7
      %v1284 = vsub.s32 0, %v1283
      %v1285 = vrot.slane %v1157, %v1284
      %v1286 = vlaneseq
      %v1287 = vshrl.u32 %v1286, 7
      %v1288 = vsub.s32 0, %v1287
      %v1289 = vrot.slane %v1161, %v1288
      %v1290 = vlaneseq
      %v1291 = vshrl.u32 %v1290, 7
      %v1292 = vsub.s32 0, %v1291
      %v1293 = vrot.slane %v1165, %v1292
      %v1294 = vlaneseq
      %v1295 = vshrl.u32 %v1294, 7
      %v1296 = vsub.s32 0, %v1295
      %v1297 = vrot.slane %v1169, %v1296
      %v1298 = vlaneseq
      %v1299 = vshrl.u32 %v1298, 7
      %v1300 = vsub.s32 0, %v1299
      %v1301 = vrot.slane %v1173, %v1300
      %vm1302 = vcmp.eq.s32.totalorder %v1177, %v1045
      %vm1303 = vcmp.eq.s32.totalorder %v1181, %v1045
      %vm1304 = vcmp.eq.s32.totalorder %v1185, %v1045
      %vm1305 = vcmp.eq.s32.totalorder %v1189, %v1045
      %vm1306 = vcmp.eq.s32.totalorder %v1193, %v1045
      %vm1307 = vcmp.eq.s32.totalorder %v1197, %v1045
      %vm1308 = vcmp.eq.s32.totalorder %v1201, %v1045
      %vm1309 = vcmp.eq.s32.totalorder %v1205, %v1045
      %vm1310 = vcmp.eq.s32.totalorder %v1209, %v1045
      %vm1311 = vcmp.eq.s32.totalorder %v1213, %v1045
      %vm1312 = vcmp.eq.s32.totalorder %v1217, %v1045
      %vm1313 = vcmp.eq.s32.totalorder %v1221, %v1045
      %vm1314 = vcmp.eq.s32.totalorder %v1225, %v1045
      %vm1315 = vcmp.eq.s32.totalorder %v1229, %v1045
      %vm1316 = vcmp.eq.s32.totalorder %v1233, %v1045
      %vm1317 = vcmp.eq.s32.totalorder %v1237, %v1045
      %vm1318 = vcmp.eq.s32.totalorder %v1241, %v1045
      %vm1319 = vcmp.eq.s32.totalorder %v1245, %v1045
      %vm1320 = vcmp.eq.s32.totalorder %v1249, %v1045
      %vm1321 = vcmp.eq.s32.totalorder %v1253, %v1045
      %vm1322 = vcmp.eq.s32.totalorder %v1257, %v1045
      %vm1323 = vcmp.eq.s32.totalorder %v1261, %v1045
      %vm1324 = vcmp.eq.s32.totalorder %v1265, %v1045
      %vm1325 = vcmp.eq.s32.totalorder %v1269, %v1045
      %vm1326 = vcmp.eq.s32.totalorder %v1273, %v1045
      %vm1327 = vcmp.eq.s32.totalorder %v1277, %v1045
      %vm1328 = vcmp.eq.s32.totalorder %v1281, %v1045
      %vm1329 = vcmp.eq.s32.totalorder %v1285, %v1045
      %vm1330 = vcmp.eq.s32.totalorder %v1289, %v1045
      %vm1331 = vcmp.eq.s32.totalorder %v1293, %v1045
      %vm1332 = vcmp.eq.s32.totalorder %v1297, %v1045
      %vm1333 = vcmp.eq.s32.totalorder %v1301, %v1045
      %v1334 = vld [vmem:[#allocation2] sm:$0xf]
      %v1351 = vcombine.high %v1028, %v1028
      %v1352 = vcombine.high %v1029, %v1029
      %v1353 = vcombine.high %v1030, %v1030
      %v1354 = vcombine.high %v1031, %v1031
      %v1355 = vcombine.high %v1032, %v1032
      %v1356 = vcombine.high %v1033, %v1033
      %v1357 = vcombine.high %v1034, %v1034
      %v1358 = vcombine.high %v1035, %v1035
      %v1359 = vcombine.high %v1036, %v1036
      %v1360 = vcombine.high %v1037, %v1037
      %v1361 = vcombine.high %v1038, %v1038
      %v1362 = vcombine.high %v1039, %v1039
      %v1363 = vcombine.high %v1040, %v1040
      %v1364 = vcombine.high %v1041, %v1041
      %v1365 = vcombine.high %v1042, %v1042
      %v1366 = vcombine.high %v1043, %v1043
      %v1383 = vsel %vm1302, %v1028, 0.0
      %v1384 = vsel %vm1303, %v1351, 0.0
      %v1385 = vsel %vm1304, %v1029, 0.0
      %v1386 = vsel %vm1305, %v1352, 0.0
      %v1387 = vsel %vm1306, %v1030, 0.0
      %v1388 = vsel %vm1307, %v1353, 0.0
      %v1389 = vsel %vm1308, %v1031, 0.0
      %v1390 = vsel %vm1309, %v1354, 0.0
      %v1391 = vsel %vm1310, %v1032, 0.0
      %v1392 = vsel %vm1311, %v1355, 0.0
      %v1393 = vsel %vm1312, %v1033, 0.0
      %v1394 = vsel %vm1313, %v1356, 0.0
      %v1395 = vsel %vm1314, %v1034, 0.0
      %v1396 = vsel %vm1315, %v1357, 0.0
      %v1397 = vsel %vm1316, %v1035, 0.0
      %v1398 = vsel %vm1317, %v1358, 0.0
      %v1399 = vsel %vm1318, %v1036, 0.0
      %v1400 = vsel %vm1319, %v1359, 0.0
      %v1401 = vsel %vm1320, %v1037, 0.0
      %v1402 = vsel %vm1321, %v1360, 0.0
      %v1403 = vsel %vm1322, %v1038, 0.0
      %v1404 = vsel %vm1323, %v1361, 0.0
      %v1405 = vsel %vm1324, %v1039, 0.0
      %v1406 = vsel %vm1325, %v1362, 0.0
      %v1407 = vsel %vm1326, %v1040, 0.0
      %v1408 = vsel %vm1327, %v1363, 0.0
      %v1409 = vsel %vm1328, %v1041, 0.0
      %v1410 = vsel %vm1329, %v1364, 0.0
      %v1411 = vsel %vm1330, %v1042, 0.0
      %v1412 = vsel %vm1331, %v1365, 0.0
      %v1413 = vsel %vm1332, %v1043, 0.0
      %v1414 = vsel %vm1333, %v1366, 0.0
      %v1415 = vadd.f32 %v1383, %v1399
      %v1416 = vadd.f32 %v1384, %v1400
      %v1417 = vadd.f32 %v1385, %v1401
      %v1418 = vadd.f32 %v1386, %v1402
      %v1419 = vadd.f32 %v1387, %v1403
      %v1420 = vadd.f32 %v1388, %v1404
      %v1421 = vadd.f32 %v1389, %v1405
      %v1422 = vadd.f32 %v1390, %v1406
      %v1423 = vadd.f32 %v1391, %v1407
      %v1424 = vadd.f32 %v1392, %v1408
      %v1425 = vadd.f32 %v1393, %v1409
      %v1426 = vadd.f32 %v1394, %v1410
      %v1427 = vadd.f32 %v1395, %v1411
      %v1428 = vadd.f32 %v1396, %v1412
      %v1429 = vadd.f32 %v1397, %v1413
      %v1430 = vadd.f32 %v1398, %v1414
      %v1431 = vadd.f32 %v1415, %v1423
      %v1432 = vadd.f32 %v1416, %v1424
      %v1433 = vadd.f32 %v1417, %v1425
      %v1434 = vadd.f32 %v1418, %v1426
      %v1435 = vadd.f32 %v1419, %v1427
      %v1436 = vadd.f32 %v1420, %v1428
      %v1437 = vadd.f32 %v1421, %v1429
      %v1438 = vadd.f32 %v1422, %v1430
      %v1439 = vadd.f32 %v1431, %v1435
      %v1440 = vadd.f32 %v1432, %v1436
      %v1441 = vadd.f32 %v1433, %v1437
      %v1442 = vadd.f32 %v1434, %v1438
      %v1443 = vadd.f32 %v1439, %v1441
      %v1444 = vadd.f32 %v1440, %v1442
      %v1445 = vadd.f32 %v1443, %v1444
      %v1446 = vadd.f32 %v1334, %v1445
      %1447 = vst [vmem:[#allocation2] sm:$0xf] %v1446
      %v1448 = vld [vmem:[#allocation3] sm:$0xf]
      %v1449 = vmul.f32 %v1028, %v1028
      %v1450 = vmul.f32 %v1029, %v1029
      %v1451 = vmul.f32 %v1030, %v1030
      %v1452 = vmul.f32 %v1031, %v1031
      %v1453 = vmul.f32 %v1032, %v1032
      %v1454 = vmul.f32 %v1033, %v1033
      %v1455 = vmul.f32 %v1034, %v1034
      %v1456 = vmul.f32 %v1035, %v1035
      %v1457 = vmul.f32 %v1036, %v1036
      %v1458 = vmul.f32 %v1037, %v1037
      %v1459 = vmul.f32 %v1038, %v1038
      %v1460 = vmul.f32 %v1039, %v1039
      %v1461 = vmul.f32 %v1040, %v1040
      %v1462 = vmul.f32 %v1041, %v1041
      %v1463 = vmul.f32 %v1042, %v1042
      %v1464 = vmul.f32 %v1043, %v1043
      %v1465 = vadd.f32 %v1449, %v1457
      %v1466 = vadd.f32 %v1450, %v1458
      %v1467 = vadd.f32 %v1451, %v1459
      %v1468 = vadd.f32 %v1452, %v1460
      %v1469 = vadd.f32 %v1453, %v1461
      %v1470 = vadd.f32 %v1454, %v1462
      %v1471 = vadd.f32 %v1455, %v1463
      %v1472 = vadd.f32 %v1456, %v1464
      %v1473 = vadd.f32 %v1465, %v1469
      %v1474 = vadd.f32 %v1466, %v1470
      %v1475 = vadd.f32 %v1467, %v1471
      %v1476 = vadd.f32 %v1468, %v1472
      %v1477 = vadd.f32 %v1473, %v1475
      %v1478 = vadd.f32 %v1474, %v1476
      %v1479 = vadd.f32 %v1477, %v1478
      %v1481 = vrot.slane %v1479, 4
      %v1483 = vadd.f32 %v1479, %v1481
      %v1484 = vadd.f32 %v1448, %v1483
      %1485 = vst [vmem:[#allocation3] sm:$0xf] %v1484
      %v1486 = vld [vmem:[#allocation4] sm:$0xf]
      %v1487 = vsel %vm1302, 1, 0
      %v1488 = vsel %vm1303, 1, 0
      %v1489 = vsel %vm1304, 1, 0
      %v1490 = vsel %vm1305, 1, 0
      %v1491 = vsel %vm1306, 1, 0
      %v1492 = vsel %vm1307, 1, 0
      %v1493 = vsel %vm1308, 1, 0
      %v1494 = vsel %vm1309, 1, 0
      %v1495 = vsel %vm1310, 1, 0
      %v1496 = vsel %vm1311, 1, 0
      %v1497 = vsel %vm1312, 1, 0
      %v1498 = vsel %vm1313, 1, 0
      %v1499 = vsel %vm1314, 1, 0
      %v1500 = vsel %vm1315, 1, 0
      %v1501 = vsel %vm1316, 1, 0
      %v1502 = vsel %vm1317, 1, 0
      %v1503 = vsel %vm1318, 1, 0
      %v1504 = vsel %vm1319, 1, 0
      %v1505 = vsel %vm1320, 1, 0
      %v1506 = vsel %vm1321, 1, 0
      %v1507 = vsel %vm1322, 1, 0
      %v1508 = vsel %vm1323, 1, 0
      %v1509 = vsel %vm1324, 1, 0
      %v1510 = vsel %vm1325, 1, 0
      %v1511 = vsel %vm1326, 1, 0
      %v1512 = vsel %vm1327, 1, 0
      %v1513 = vsel %vm1328, 1, 0
      %v1514 = vsel %vm1329, 1, 0
      %v1515 = vsel %vm1330, 1, 0
      %v1516 = vsel %vm1331, 1, 0
      %v1517 = vsel %vm1332, 1, 0
      %v1518 = vsel %vm1333, 1, 0
      %v1519 = vcvt.s32.f32 %v1487
      %v1520 = vcvt.s32.f32 %v1488
      %v1521 = vcvt.s32.f32 %v1489
      %v1522 = vcvt.s32.f32 %v1490
      %v1523 = vcvt.s32.f32 %v1491
      %v1524 = vcvt.s32.f32 %v1492
      %v1525 = vcvt.s32.f32 %v1493
      %v1526 = vcvt.s32.f32 %v1494
      %v1527 = vcvt.s32.f32 %v1495
      %v1528 = vcvt.s32.f32 %v1496
      %v1529 = vcvt.s32.f32 %v1497
      %v1530 = vcvt.s32.f32 %v1498
      %v1531 = vcvt.s32.f32 %v1499
      %v1532 = vcvt.s32.f32 %v1500
      %v1533 = vcvt.s32.f32 %v1501
      %v1534 = vcvt.s32.f32 %v1502
      %v1535 = vcvt.s32.f32 %v1503
      %v1536 = vcvt.s32.f32 %v1504
      %v1537 = vcvt.s32.f32 %v1505
      %v1538 = vcvt.s32.f32 %v1506
      %v1539 = vcvt.s32.f32 %v1507
      %v1540 = vcvt.s32.f32 %v1508
      %v1541 = vcvt.s32.f32 %v1509
      %v1542 = vcvt.s32.f32 %v1510
      %v1543 = vcvt.s32.f32 %v1511
      %v1544 = vcvt.s32.f32 %v1512
      %v1545 = vcvt.s32.f32 %v1513
      %v1546 = vcvt.s32.f32 %v1514
      %v1547 = vcvt.s32.f32 %v1515
      %v1548 = vcvt.s32.f32 %v1516
      %v1549 = vcvt.s32.f32 %v1517
      %v1550 = vcvt.s32.f32 %v1518
      %v1551 = vadd.f32 %v1519, %v1535
      %v1552 = vadd.f32 %v1520, %v1536
      %v1553 = vadd.f32 %v1521, %v1537
      %v1554 = vadd.f32 %v1522, %v1538
      %v1555 = vadd.f32 %v1523, %v1539
      %v1556 = vadd.f32 %v1524, %v1540
      %v1557 = vadd.f32 %v1525, %v1541
      %v1558 = vadd.f32 %v1526, %v1542
      %v1559 = vadd.f32 %v1527, %v1543
      %v1560 = vadd.f32 %v1528, %v1544
      %v1561 = vadd.f32 %v1529, %v1545
      %v1562 = vadd.f32 %v1530, %v1546
      %v1563 = vadd.f32 %v1531, %v1547
      %v1564 = vadd.f32 %v1532, %v1548
      %v1565 = vadd.f32 %v1533, %v1549
      %v1566 = vadd.f32 %v1534, %v1550
      %v1567 = vadd.f32 %v1551, %v1559
      %v1568 = vadd.f32 %v1552, %v1560
      %v1569 = vadd.f32 %v1553, %v1561
      %v1570 = vadd.f32 %v1554, %v1562
      %v1571 = vadd.f32 %v1555, %v1563
      %v1572 = vadd.f32 %v1556, %v1564
      %v1573 = vadd.f32 %v1557, %v1565
      %v1574 = vadd.f32 %v1558, %v1566
      %v1575 = vadd.f32 %v1567, %v1571
      %v1576 = vadd.f32 %v1568, %v1572
      %v1577 = vadd.f32 %v1569, %v1573
      %v1578 = vadd.f32 %v1570, %v1574
      %v1579 = vadd.f32 %v1575, %v1577
      %v1580 = vadd.f32 %v1576, %v1578
      %v1581 = vadd.f32 %v1579, %v1580
      %v1582 = vadd.f32 %v1486, %v1581
      %1583 = vst [vmem:[#allocation4] sm:$0xf] %v1582
      // Predicated region
      $region33: #{dice_loss.1} parent=27 // pred_check
        %p1584 = pneg %p232
      $region34: #{dice_loss.1} parent=27 // pred_check_branch
        %1586 = sbr.rel (%p1584) target = $region36
      $region35: #{dice_loss.1} parent=27 // pred_region
        %v1587 = vld [vmem:[#allocation2] sm:$0xf]
        %v1588 = vsel %vm323, %v1587, 0.0
        %1589 = vadd.xlane.f32.xlu0 %v1588
        %v1590 = vpop.xlane.xlu0 %1589
        %v1591 = vld [vmem:[#allocation3] sm:$0xf]
        %v1592 = vsel %vm323, %v1591, 0.0
        %1593 = vadd.xlane.f32.xlu0 %v1592
        %v1594 = vpop.xlane.xlu0 %1593
        %v1595 = vld [vmem:[#allocation4] sm:$0xf]
        %v1596 = vsel %vm323, %v1595, 0.0
        %1597 = vadd.xlane.f32.xlu0 %v1596
        %v1598 = vpop.xlane.xlu0 %1597
        %vm1599 = vcmask 7168
        %v1600 = vsel %vm1599, %v1590, %v1594
        %vm1601 = vcmask 15360
        %v1602 = vsel %vm1601, %v1600, %v1598
        %vm1603 = vcmask 19456
        %1604 = vst.msk [vmem:[%s231] sm:$0xf] %vm1603, %v1602
      $region36: #{dice_loss.1} parent=27 // pred_fallthru
        _
      %p1605 = scmp.lt.s32.totalorder %s18, 1
      %s1606 = scalar_select %p1605, %s18, 1
      %p1607 = scmp.lt.s32.totalorder %s19, 0
      %s1608 = scalar_select %p1607, %s19, 0
      %s1609 = sadd.s32 %s1608, %s1606
      %s1610 = smul.addr %s1609, 4
      %s1611 = scalar_lea.vmem %s2, %s1610
      // Predicated region
      $region37: #{dice_loss.1} parent=27 // pred_check
        %p1612 = pneg %p112
      $region38: #{dice_loss.1} parent=27 // pred_check_branch
        %1614 = sbr.rel (%p1612) target = $region40
      $region39: #{dice_loss.1} parent=27 // pred_region
        _
      $region40: #{dice_loss.1} parent=27 // pred_fallthru
        _
    $region28: #{dice_loss.1} parent=5 // pred_fallthru
      _
    %p1615 = scmp.le.s32.totalorder 2, %s8
    // Predicated region
    $region41: #{dice_loss.1} parent=5 // pred_check
      %p1616 = pneg %p1615
    $region42: #{dice_loss.1} parent=5 // pred_check_branch
      %1618 = sbr.rel (%p1616) target = $region44
    $region43: #{dice_loss.1} parent=5 // pred_region
      %s1619 = ssub.s32 %s8, 2
      // Predicated region
      $region45: #{dice_loss.1} parent=43 // pred_check
        %p1620 = pneg %p118
      $region46: #{dice_loss.1} parent=43 // pred_check_branch
        %1622 = sbr.rel (%p1620) target = $region48
      $region47: #{dice_loss.1} parent=43 // pred_region
        %p1623 = scmp.lt.s32.totalorder %s21, 1
        %s1624 = scalar_select %p1623, %s21, 1
        %p1625 = scmp.lt.s32.totalorder %s22, 0
        %s1626 = scalar_select %p1625, %s22, 0
        %s1627 = sadd.s32 %s1626, %s1624
        %s1628 = smul.addr %s1627, 4
        %s1629 = scalar_lea.vmem %s2, %s1628
      $region48: #{dice_loss.1} parent=43 // pred_fallthru
        _
    $region44: #{dice_loss.1} parent=5 // pred_fallthru
      _
  $region6: #{dice_loss.1} parent=0 // loop_footer
    %s12 = sadd.s32 1, %s8
  $region7: #{dice_loss.1} parent=0 // loop_footer_branch
    %7 = sbr.rel target = $region3
  $region8: #{dice_loss.1} parent=0 // loop_exit
    _

</llo_original>
